<compile_context>
chip_gen: v5e
topology: v5e:2x2
jax: 0.10.0
libtpu: 0.0.40
codegen_flags: <defaults>
</compile_context>

<pallas_src>
import functools

import jax
import jax.numpy as jnp
from jax.experimental import pallas as pl
from jax.experimental.pallas import tpu as pltpu

EPS = 1e-5


# --------------------------------------------------------------------------
# Fused kernel: pool -> attention MLP -> gated multiply, one batch per step.
# --------------------------------------------------------------------------
def _ca_fused_kernel(x_ref, p_ref, w1_ref, s_ref, t_ref,
                     wh_ref, bh_ref, ww_ref, bw_ref,
                     eh_ref, ew_ref, o_ref, *, H, W):
    # x tile is lane-dense (C, H*W); cast native dtype -> f32 for the math.
    x = x_ref[0].astype(jnp.float32)                              # (C, H*W)

    # Both directional average pools in one MXU matmul:
    #   pooled[:, :H] = mean over W, pooled[:, H:] = mean over H.
    pooled = jnp.dot(x, p_ref[...],
                     preferred_element_type=jnp.float32)          # (C, H+W)

    # conv1 (1x1) with bias + eval-mode BatchNorm folded into y*s + t,
    # followed by h_swish, for both directions at once.
    y = jnp.dot(w1_ref[...], pooled,
                preferred_element_type=jnp.float32)               # (hid, H+W)
    y = y * s_ref[...] + t_ref[...]
    y = y * jnp.clip(y + 3.0, 0.0, 6.0) * (1.0 / 6.0)             # h_swish

    yh = y[:, :H]                                                 # (hid, H)
    yw = y[:, H:]                                                 # (hid, W)

    # Per-direction 1x1 convs + sigmoid (exp on EUP; tensors are tiny).
    zh = jnp.dot(wh_ref[...], yh,
                 preferred_element_type=jnp.float32) + bh_ref[...]   # (C, H)
    zw = jnp.dot(ww_ref[...], yw,
                 preferred_element_type=jnp.float32) + bw_ref[...]   # (C, W)
    ah = 1.0 / (1.0 + jnp.exp(-zh))
    aw = 1.0 / (1.0 + jnp.exp(-zw))

    # Combined gate, lane-dense (C, H*W), via 0/1 expansion matmuls:
    #   g[c, h*W+w] = ah[c, h] * aw[c, w]
    g = (jnp.dot(ah, eh_ref[...], preferred_element_type=jnp.float32)
         * jnp.dot(aw, ew_ref[...], preferred_element_type=jnp.float32))

    o_ref[0] = (x * g).astype(o_ref.dtype)


# --------------------------------------------------------------------------
# CALayer forward (single pallas_call)
# --------------------------------------------------------------------------
def ca_layer(params, x):
    B, C, H, W = x.shape
    HW = H * W
    hid = params["w1"].shape[0]
    f32 = jnp.float32

    # Fold conv1 bias + eval-mode BN into one affine: y*s + t.
    s = params["bn_gamma"] / jnp.sqrt(params["bn_var"] + EPS)
    t = params["bn_beta"] + s * (params["b1"] - params["bn_mean"])

    # Constant pooling / expansion matrices (constant-folded by XLA).
    lin = jnp.arange(HW)
    h_idx = lin // W
    w_idx = lin % W
    ph = (h_idx[:, None] == jnp.arange(H)[None, :]).astype(f32) / W   # (HW, H)
    pw = (w_idx[:, None] == jnp.arange(W)[None, :]).astype(f32) / H   # (HW, W)
    pool_mat = jnp.concatenate([ph, pw], axis=1)                      # (HW, H+W)
    eh = (jnp.arange(H)[:, None] == h_idx[None, :]).astype(f32)       # (H, HW)
    ew = (jnp.arange(W)[:, None] == w_idx[None, :]).astype(f32)       # (W, HW)

    # Lane-dense HBM-facing layout (free row-major reshape), native dtype.
    x2 = x.reshape(B, C, HW)

    def param_spec(shape):
        return pl.BlockSpec(shape, lambda b, _n=len(shape): (0,) * _n)

    out2 = pl.pallas_call(
        functools.partial(_ca_fused_kernel, H=H, W=W),
        out_shape=jax.ShapeDtypeStruct((B, C, HW), x.dtype),
        grid=(B,),
        in_specs=[
            pl.BlockSpec((1, C, HW), lambda b: (b, 0, 0)),   # x (lane-dense)
            param_spec((HW, H + W)),                         # pooling matrix
            param_spec((hid, C)),                            # conv1 weight
            param_spec((hid, 1)),                            # BN scale
            param_spec((hid, 1)),                            # BN shift (+bias)
            param_spec((C, hid)),                            # conv_h weight
            param_spec((C, 1)),                              # conv_h bias
            param_spec((C, hid)),                            # conv_w weight
            param_spec((C, 1)),                              # conv_w bias
            param_spec((H, HW)),                             # h expansion
            param_spec((W, HW)),                             # w expansion
        ],
        out_specs=pl.BlockSpec((1, C, HW), lambda b: (b, 0, 0)),
        compiler_params=pltpu.CompilerParams(
            dimension_semantics=("parallel",)),
    )(x2, pool_mat,
      params["w1"].astype(f32),
      s.reshape(hid, 1).astype(f32),
      t.reshape(hid, 1).astype(f32),
      params["wh"].astype(f32), params["bh"].reshape(C, 1).astype(f32),
      params["ww"].astype(f32), params["bw"].reshape(C, 1).astype(f32),
      eh, ew)

    return out2.reshape(B, C, H, W)


# --------------------------------------------------------------------------
# Pure-JAX reference (mirrors the PyTorch forward) for correctness checking
# --------------------------------------------------------------------------
def ca_layer_ref(params, x):
    hp = jax.lax.Precision.HIGHEST
    xf = x.astype(jnp.float32)
    xh = jnp.mean(xf, axis=3)                                  # (B, C, H)
    xw = jnp.mean(xf, axis=2)                                  # (B, C, W)

    def squeeze(z):                                            # (B, C, L)
        y = jnp.einsum("oc,bcl->bol", params["w1"], z, precision=hp) \
            + params["b1"][None, :, None]
        y = (y - params["bn_mean"][None, :, None]) \
            * (params["bn_gamma"] / jnp.sqrt(params["bn_var"] + EPS))[None, :, None] \
            + params["bn_beta"][None, :, None]
        return y * jnp.clip(y + 3.0, 0.0, 6.0) / 6.0           # h_swish

    yh = squeeze(xh)
    yw = squeeze(xw)
    zh = jnp.einsum("oc,bcl->bol", params["wh"], yh, precision=hp) \
        + params["bh"][None, :, None]
    zw = jnp.einsum("oc,bcl->bol", params["ww"], yw, precision=hp) \
        + params["bw"][None, :, None]
    ah = jax.nn.sigmoid(zh)
    aw = jax.nn.sigmoid(zw)
    out = xf * ah[:, :, :, None] * aw[:, :, None, :]
    return out.astype(x.dtype)


# --------------------------------------------------------------------------
# Deterministic parameter construction (CALayer(inplace=C, reduction=32))
# --------------------------------------------------------------------------
def init_params(key, c, reduction=32):
    hid = max(8, c // reduction)
    ks = jax.random.split(key, 6)

    def conv_w(k, shape):
        fan_in = shape[1]
        return jax.random.normal(k, shape, jnp.float32) / jnp.sqrt(fan_in)

    return dict(
        w1=conv_w(ks[0], (hid, c)),                       # conv1 (1x1) weight
        b1=0.1 * jax.random.normal(ks[1], (hid,), jnp.float32),
        bn_gamma=jnp.ones((hid,), jnp.float32),
        bn_beta=jnp.zeros((hid,), jnp.float32),
        bn_mean=jnp.zeros((hid,), jnp.float32),
        bn_var=jnp.ones((hid,), jnp.float32),
        wh=conv_w(ks[2], (c, hid)),                       # conv_h (1x1)
        bh=0.1 * jax.random.normal(ks[3], (c,), jnp.float32),
        ww=conv_w(ks[4], (c, hid)),                       # conv_w (1x1)
        bw=0.1 * jax.random.normal(ks[5], (c,), jnp.float32),
    )


if __name__ == "__main__":
    key = jax.random.PRNGKey(0)
    pkey, xkey = jax.random.split(key)

    B, C, H, W = 2, 64, 16, 16          # hidden_dim = max(8, 64 // 32) = 8
    params = init_params(pkey, C, reduction=32)
    x = jax.random.normal(xkey, (B, C, H, W), jnp.float32)

    fwd = jax.jit(ca_layer)
    out = jax.block_until_ready(fwd(params, x))

    assert out.shape == (B, C, H, W), out.shape
    assert out.dtype == x.dtype
    assert bool(jnp.all(jnp.isfinite(out)))

    ref = ca_layer_ref(params, x)
    max_err = float(jnp.max(jnp.abs(out - ref)))
    # Tolerance accounts for MXU matmul accumulation-order / precision.
    assert bool(jnp.allclose(out, ref, rtol=1e-3, atol=1e-3)), max_err

    # Native bf16 HBM I/O path (cast to f32 in-kernel, bf16 out).
    xb = x.astype(jnp.bfloat16)
    outb = jax.block_until_ready(jax.jit(ca_layer)(params, xb))
    assert outb.dtype == jnp.bfloat16
    assert bool(jnp.all(jnp.isfinite(outb.astype(jnp.float32))))

    print("KERNEL_OK")
</pallas_src>

<mosaic_0001>
module attributes {stable_mosaic.version = 11 : i64} {
  func.func @_ca_fused_kernel(%arg0: i32, %arg1: memref<1x64x256xf32, #tpu.memory_space<vmem>>, %arg2: memref<256x32xf32, #tpu.memory_space<vmem>>, %arg3: memref<8x64xf32, #tpu.memory_space<vmem>>, %arg4: memref<8x1xf32, #tpu.memory_space<vmem>>, %arg5: memref<8x1xf32, #tpu.memory_space<vmem>>, %arg6: memref<64x8xf32, #tpu.memory_space<vmem>>, %arg7: memref<64x1xf32, #tpu.memory_space<vmem>>, %arg8: memref<64x8xf32, #tpu.memory_space<vmem>>, %arg9: memref<64x1xf32, #tpu.memory_space<vmem>>, %arg10: memref<16x256xf32, #tpu.memory_space<vmem>>, %arg11: memref<16x256xf32, #tpu.memory_space<vmem>>, %arg12: memref<1x64x256xf32, #tpu.memory_space<vmem>>) attributes {dimension_semantics = [#tpu.dimension_semantics<parallel>], iteration_bounds = array<i64: 2>, scalar_prefetch = 0 : i64, scratch_operands = 0 : i64, tpu.core_type = #tpu.core_type<tc>, window_params = [{transform_indices = @transform_0, window_bounds = array<i64: 1, 64, 256>}, {pipeline_mode = #tpu.pipeline_mode<synchronous>, transform_indices = @transform_1, window_bounds = array<i64: 256, 32>}, {pipeline_mode = #tpu.pipeline_mode<synchronous>, transform_indices = @transform_2, window_bounds = array<i64: 8, 64>}, {pipeline_mode = #tpu.pipeline_mode<synchronous>, transform_indices = @transform_3, window_bounds = array<i64: 8, 1>}, {pipeline_mode = #tpu.pipeline_mode<synchronous>, transform_indices = @transform_4, window_bounds = array<i64: 8, 1>}, {pipeline_mode = #tpu.pipeline_mode<synchronous>, transform_indices = @transform_5, window_bounds = array<i64: 64, 8>}, {pipeline_mode = #tpu.pipeline_mode<synchronous>, transform_indices = @transform_6, window_bounds = array<i64: 64, 1>}, {pipeline_mode = #tpu.pipeline_mode<synchronous>, transform_indices = @transform_7, window_bounds = array<i64: 64, 8>}, {pipeline_mode = #tpu.pipeline_mode<synchronous>, transform_indices = @transform_8, window_bounds = array<i64: 64, 1>}, {pipeline_mode = #tpu.pipeline_mode<synchronous>, transform_indices = @transform_9, window_bounds = array<i64: 16, 256>}, {pipeline_mode = #tpu.pipeline_mode<synchronous>, transform_indices = @transform_10, window_bounds = array<i64: 16, 256>}, {transform_indices = @transform_11, window_bounds = array<i64: 1, 64, 256>}]} {
    %c0 = arith.constant 0 : index
    %c0_0 = arith.constant 0 : index
    %c0_1 = arith.constant 0 : index
    %0 = vector.load %arg1[%c0, %c0_0, %c0_1] : memref<1x64x256xf32, #tpu.memory_space<vmem>>, vector<1x64x256xf32>
    %1 = vector.shape_cast %0 : vector<1x64x256xf32> to vector<64x256xf32>
    %c0_2 = arith.constant 0 : index
    %c0_3 = arith.constant 0 : index
    %2 = vector.load %arg2[%c0_2, %c0_3] : memref<256x32xf32, #tpu.memory_space<vmem>>, vector<256x32xf32>
    %cst = arith.constant dense<0.000000e+00> : vector<64x32xf32>
    %3 = tpu.matmul %1, %2, %cst {dimension_numbers = #tpu.dot_dimension_numbers<[1], [0], [0], [1], [0, 0, 1, 1], [], []>} : vector<64x256xf32>, vector<256x32xf32>, vector<64x32xf32> -> vector<64x32xf32>
    %c0_4 = arith.constant 0 : index
    %c0_5 = arith.constant 0 : index
    %4 = vector.load %arg3[%c0_4, %c0_5] : memref<8x64xf32, #tpu.memory_space<vmem>>, vector<8x64xf32>
    %cst_6 = arith.constant dense<0.000000e+00> : vector<8x32xf32>
    %5 = tpu.matmul %4, %3, %cst_6 {dimension_numbers = #tpu.dot_dimension_numbers<[1], [0], [0], [1], [0, 0, 1, 1], [], []>} : vector<8x64xf32>, vector<64x32xf32>, vector<8x32xf32> -> vector<8x32xf32>
    %c0_7 = arith.constant 0 : index
    %c0_8 = arith.constant 0 : index
    %6 = vector.load %arg4[%c0_7, %c0_8] : memref<8x1xf32, #tpu.memory_space<vmem>>, vector<8x1xf32>
    %7 = vector.broadcast %6 : vector<8x1xf32> to vector<8x32xf32>
    %8 = arith.mulf %5, %7 : vector<8x32xf32>
    %c0_9 = arith.constant 0 : index
    %c0_10 = arith.constant 0 : index
    %9 = vector.load %arg5[%c0_9, %c0_10] : memref<8x1xf32, #tpu.memory_space<vmem>>, vector<8x1xf32>
    %10 = vector.broadcast %9 : vector<8x1xf32> to vector<8x32xf32>
    %11 = arith.addf %8, %10 : vector<8x32xf32>
    %cst_11 = arith.constant 3.000000e+00 : f32
    %12 = vector.broadcast %cst_11 : f32 to vector<8x32xf32>
    %13 = arith.addf %11, %12 : vector<8x32xf32>
    %cst_12 = arith.constant 0.000000e+00 : f32
    %cst_13 = arith.constant 6.000000e+00 : f32
    %14 = vector.broadcast %cst_12 : f32 to vector<8x32xf32>
    %15 = arith.maximumf %14, %13 : vector<8x32xf32>
    %16 = vector.broadcast %cst_13 : f32 to vector<8x32xf32>
    %17 = arith.minimumf %16, %15 : vector<8x32xf32>
    %18 = arith.mulf %11, %17 : vector<8x32xf32>
    %cst_14 = arith.constant 0.166666672 : f32
    %19 = vector.broadcast %cst_14 : f32 to vector<8x32xf32>
    %20 = arith.mulf %18, %19 : vector<8x32xf32>
    %21 = vector.extract_strided_slice %20 {offsets = [0, 0], sizes = [8, 16], strides = [1, 1]} : vector<8x32xf32> to vector<8x16xf32>
    %22 = vector.extract_strided_slice %20 {offsets = [0, 16], sizes = [8, 16], strides = [1, 1]} : vector<8x32xf32> to vector<8x16xf32>
    %c0_15 = arith.constant 0 : index
    %c0_16 = arith.constant 0 : index
    %23 = vector.load %arg6[%c0_15, %c0_16] : memref<64x8xf32, #tpu.memory_space<vmem>>, vector<64x8xf32>
    %cst_17 = arith.constant dense<0.000000e+00> : vector<64x16xf32>
    %24 = tpu.matmul %23, %21, %cst_17 {dimension_numbers = #tpu.dot_dimension_numbers<[1], [0], [0], [1], [0, 0, 1, 1], [], []>} : vector<64x8xf32>, vector<8x16xf32>, vector<64x16xf32> -> vector<64x16xf32>
    %c0_18 = arith.constant 0 : index
    %c0_19 = arith.constant 0 : index
    %25 = vector.load %arg7[%c0_18, %c0_19] : memref<64x1xf32, #tpu.memory_space<vmem>>, vector<64x1xf32>
    %26 = vector.broadcast %25 : vector<64x1xf32> to vector<64x16xf32>
    %27 = arith.addf %24, %26 : vector<64x16xf32>
    %c0_20 = arith.constant 0 : index
    %c0_21 = arith.constant 0 : index
    %28 = vector.load %arg8[%c0_20, %c0_21] : memref<64x8xf32, #tpu.memory_space<vmem>>, vector<64x8xf32>
    %cst_22 = arith.constant dense<0.000000e+00> : vector<64x16xf32>
    %29 = tpu.matmul %28, %22, %cst_22 {dimension_numbers = #tpu.dot_dimension_numbers<[1], [0], [0], [1], [0, 0, 1, 1], [], []>} : vector<64x8xf32>, vector<8x16xf32>, vector<64x16xf32> -> vector<64x16xf32>
    %c0_23 = arith.constant 0 : index
    %c0_24 = arith.constant 0 : index
    %30 = vector.load %arg9[%c0_23, %c0_24] : memref<64x1xf32, #tpu.memory_space<vmem>>, vector<64x1xf32>
    %31 = vector.broadcast %30 : vector<64x1xf32> to vector<64x16xf32>
    %32 = arith.addf %29, %31 : vector<64x16xf32>
    %cst_25 = arith.constant 0.000000e+00 : f32
    %33 = vector.broadcast %cst_25 : f32 to vector<64x16xf32>
    %34 = arith.subf %33, %27 : vector<64x16xf32>
    %35 = math.exp %34 : vector<64x16xf32>
    %cst_26 = arith.constant 1.000000e+00 : f32
    %36 = vector.broadcast %cst_26 : f32 to vector<64x16xf32>
    %37 = arith.addf %36, %35 : vector<64x16xf32>
    %cst_27 = arith.constant 1.000000e+00 : f32
    %38 = vector.broadcast %cst_27 : f32 to vector<64x16xf32>
    %39 = arith.divf %38, %37 : vector<64x16xf32>
    %cst_28 = arith.constant 0.000000e+00 : f32
    %40 = vector.broadcast %cst_28 : f32 to vector<64x16xf32>
    %41 = arith.subf %40, %32 : vector<64x16xf32>
    %42 = math.exp %41 : vector<64x16xf32>
    %cst_29 = arith.constant 1.000000e+00 : f32
    %43 = vector.broadcast %cst_29 : f32 to vector<64x16xf32>
    %44 = arith.addf %43, %42 : vector<64x16xf32>
    %cst_30 = arith.constant 1.000000e+00 : f32
    %45 = vector.broadcast %cst_30 : f32 to vector<64x16xf32>
    %46 = arith.divf %45, %44 : vector<64x16xf32>
    %c0_31 = arith.constant 0 : index
    %c0_32 = arith.constant 0 : index
    %47 = vector.load %arg10[%c0_31, %c0_32] : memref<16x256xf32, #tpu.memory_space<vmem>>, vector<16x256xf32>
    %cst_33 = arith.constant dense<0.000000e+00> : vector<64x256xf32>
    %48 = tpu.matmul %39, %47, %cst_33 {dimension_numbers = #tpu.dot_dimension_numbers<[1], [0], [0], [1], [0, 0, 1, 1], [], []>} : vector<64x16xf32>, vector<16x256xf32>, vector<64x256xf32> -> vector<64x256xf32>
    %c0_34 = arith.constant 0 : index
    %c0_35 = arith.constant 0 : index
    %49 = vector.load %arg11[%c0_34, %c0_35] : memref<16x256xf32, #tpu.memory_space<vmem>>, vector<16x256xf32>
    %cst_36 = arith.constant dense<0.000000e+00> : vector<64x256xf32>
    %50 = tpu.matmul %46, %49, %cst_36 {dimension_numbers = #tpu.dot_dimension_numbers<[1], [0], [0], [1], [0, 0, 1, 1], [], []>} : vector<64x16xf32>, vector<16x256xf32>, vector<64x256xf32> -> vector<64x256xf32>
    %51 = arith.mulf %48, %50 : vector<64x256xf32>
    %52 = arith.mulf %1, %51 : vector<64x256xf32>
    %c0_37 = arith.constant 0 : index
    %c0_38 = arith.constant 0 : index
    %c0_39 = arith.constant 0 : index
    %53 = vector.load %arg12[%c0_37, %c0_38, %c0_39] : memref<1x64x256xf32, #tpu.memory_space<vmem>>, vector<1x64x256xf32>
    %54 = vector.shape_cast %53 : vector<1x64x256xf32> to vector<64x256xf32>
    %55 = vector.shape_cast %52 : vector<64x256xf32> to vector<1x64x256xf32>
    tpu.vector_store %arg12[%c0_37, %c0_38, %c0_39], %55 {strides = array<i32>} : memref<1x64x256xf32, #tpu.memory_space<vmem>>, vector<1x64x256xf32>,
    return
  }
  func.func @transform_0(%arg0: i32) -> (i32, i32, i32) {
    %c0_i32 = arith.constant 0 : i32
    %c0_i32_0 = arith.constant 0 : i32
    %c0_i32_1 = arith.constant 0 : i32
    return %arg0, %c0_i32, %c0_i32_0 : i32, i32, i32
  }
  func.func @transform_1(%arg0: i32) -> (i32, i32) {
    %c0_i32 = arith.constant 0 : i32
    %c0_i32_0 = arith.constant 0 : i32
    %c0_i32_1 = arith.constant 0 : i32
    return %c0_i32, %c0_i32_0 : i32, i32
  }
  func.func @transform_2(%arg0: i32) -> (i32, i32) {
    %c0_i32 = arith.constant 0 : i32
    %c0_i32_0 = arith.constant 0 : i32
    %c0_i32_1 = arith.constant 0 : i32
    return %c0_i32, %c0_i32_0 : i32, i32
  }
  func.func @transform_3(%arg0: i32) -> (i32, i32) {
    %c0_i32 = arith.constant 0 : i32
    %c0_i32_0 = arith.constant 0 : i32
    %c0_i32_1 = arith.constant 0 : i32
    return %c0_i32, %c0_i32_0 : i32, i32
  }
  func.func @transform_4(%arg0: i32) -> (i32, i32) {
    %c0_i32 = arith.constant 0 : i32
    %c0_i32_0 = arith.constant 0 : i32
    %c0_i32_1 = arith.constant 0 : i32
    return %c0_i32, %c0_i32_0 : i32, i32
  }
  func.func @transform_5(%arg0: i32) -> (i32, i32) {
    %c0_i32 = arith.constant 0 : i32
    %c0_i32_0 = arith.constant 0 : i32
    %c0_i32_1 = arith.constant 0 : i32
    return %c0_i32, %c0_i32_0 : i32, i32
  }
  func.func @transform_6(%arg0: i32) -> (i32, i32) {
    %c0_i32 = arith.constant 0 : i32
    %c0_i32_0 = arith.constant 0 : i32
    %c0_i32_1 = arith.constant 0 : i32
    return %c0_i32, %c0_i32_0 : i32, i32
  }
  func.func @transform_7(%arg0: i32) -> (i32, i32) {
    %c0_i32 = arith.constant 0 : i32
    %c0_i32_0 = arith.constant 0 : i32
    %c0_i32_1 = arith.constant 0 : i32
    return %c0_i32, %c0_i32_0 : i32, i32
  }
  func.func @transform_8(%arg0: i32) -> (i32, i32) {
    %c0_i32 = arith.constant 0 : i32
    %c0_i32_0 = arith.constant 0 : i32
    %c0_i32_1 = arith.constant 0 : i32
    return %c0_i32, %c0_i32_0 : i32, i32
  }
  func.func @transform_9(%arg0: i32) -> (i32, i32) {
    %c0_i32 = arith.constant 0 : i32
    %c0_i32_0 = arith.constant 0 : i32
    %c0_i32_1 = arith.constant 0 : i32
    return %c0_i32, %c0_i32_0 : i32, i32
  }
  func.func @transform_10(%arg0: i32) -> (i32, i32) {
    %c0_i32 = arith.constant 0 : i32
    %c0_i32_0 = arith.constant 0 : i32
    %c0_i32_1 = arith.constant 0 : i32
    return %c0_i32, %c0_i32_0 : i32, i32
  }
  func.func @transform_11(%arg0: i32) -> (i32, i32, i32) {
    %c0_i32 = arith.constant 0 : i32
    %c0_i32_0 = arith.constant 0 : i32
    %c0_i32_1 = arith.constant 0 : i32
    return %arg0, %c0_i32, %c0_i32_0 : i32, i32, i32
  }
}

</mosaic_0001>

<llo_original>
// kernel: ca_layer.1
$region0: #{ca_layer.1}
  #allocation0 [shape = 'u32[]', space=smem, size = 0x4, offset = 0x4, fixed_abs, tag = 'smem constant byte address 0x4 - core index']
  #allocation1 [shape = 'u32[72,128]{1,0:T(1,128)}', space=vmem, size = 0x9000, scoped, tag = 'internal scratch']
  %s0 = inlined_call_operand.vmem [shape: f32[2,64,256], index: 0, kind: input, shape index: {}]
  %s1 = inlined_call_operand.vmem [shape: f32[256,32], index: 1, kind: input, shape index: {}]
  %s2 = inlined_call_operand.vmem [shape: f32[8,64], index: 2, kind: input, shape index: {}]
  %s3 = inlined_call_operand.vmem [shape: f32[8,1], index: 3, kind: input, shape index: {}]
  %s4 = inlined_call_operand.vmem [shape: f32[8,1], index: 4, kind: input, shape index: {}]
  %s5 = inlined_call_operand.vmem [shape: f32[64,8], index: 5, kind: input, shape index: {}]
  %s6 = inlined_call_operand.vmem [shape: f32[64,1], index: 6, kind: input, shape index: {}]
  %s7 = inlined_call_operand.vmem [shape: f32[64,8], index: 7, kind: input, shape index: {}]
  %s8 = inlined_call_operand.vmem [shape: f32[64,1], index: 8, kind: input, shape index: {}]
  %s9 = inlined_call_operand.vmem [shape: f32[16,256], index: 9, kind: input, shape index: {}]
  %s10 = inlined_call_operand.vmem [shape: f32[16,256], index: 10, kind: input, shape index: {}]
  %s11 = inlined_call_operand.vmem [shape: f32[2,64,256], index: 11, kind: output, shape index: {}]
  %s12 = sld [smem:[#allocation0]]
  $region77: #{ca_layer.1} parent=0
    _
  %s14 = ssub.s32 1, %s12
  %s15 = scalar_select 0, %s14, %s12
  loop: start=0, step=1, limit=4
  $region2: #{ca_layer.1} parent=0 // loop_pre_header
    _
  $region3: #{ca_layer.1} parent=0 // loop_header
    %s17 = sphi 0, %s21
    %p18 = scmp.ge.s32.totalorder %s17, 4
    %s27 = sphi 0, %s29
    %s30 = sphi 0, %s27
    %s31 = sphi 0, %s30
    %s47 = sphi 0, %s31
    %s51 = sphi 0, %s51
    %s53 = sphi 0, %s51
    %s54 = sphi 0, %s53
    %s68 = sphi 0, %s54
    %s72 = sphi 0, %s72
    %s74 = sphi 0, %s72
    %s75 = sphi 0, %s74
    %s89 = sphi 0, %s75
    %s93 = sphi 0, %s93
    %s95 = sphi 0, %s93
    %s96 = sphi 0, %s95
    %s110 = sphi 0, %s96
    %s114 = sphi 0, %s114
    %s116 = sphi 0, %s114
    %s117 = sphi 0, %s116
    %s131 = sphi 0, %s117
    %s135 = sphi 0, %s135
    %s137 = sphi 0, %s135
    %s138 = sphi 0, %s137
    %s152 = sphi 0, %s138
    %s156 = sphi 0, %s156
    %s158 = sphi 0, %s156
    %s159 = sphi 0, %s158
    %s173 = sphi 0, %s159
    %s177 = sphi 0, %s177
    %s179 = sphi 0, %s177
    %s180 = sphi 0, %s179
    %s194 = sphi 0, %s180
    %s198 = sphi 0, %s198
    %s200 = sphi 0, %s198
    %s201 = sphi 0, %s200
    %s215 = sphi 0, %s201
    %s219 = sphi 0, %s219
    %s221 = sphi 0, %s219
    %s222 = sphi 0, %s221
    %s236 = sphi 0, %s222
    %s240 = sphi 0, %s240
    %s242 = sphi 0, %s240
    %s243 = sphi 0, %s242
    %s257 = sphi 0, %s243
    %s263 = sphi 0, %s265
    %s266 = sphi 0, %s263
    %s267 = sphi 0, %s266
    %s283 = sphi 0, %s267
  $region4: #{ca_layer.1} parent=0 // loop_header_branch
    %20 = sbr.rel (%p18) target = $region8
  $region5: #{ca_layer.1} parent=0 // loop_body
    %s22 = ssub.s32 %s17, 1
    %s23 = ssub.s32 %s17, 2
    %s24 = sadd.s32 %s17, 1
    %s25 = ssub.s32 %s17, %s24
    %p26 = scmp.eq.s32.totalorder %s25, 0
    %s28 = sadd.s32 %s27, 1
    %s29 = scalar_select %p26, %s27, %s28
    %p32 = pneg %p26
    %p33 = scmp.eq.s32.totalorder %s17, 1
    %p34 = por %p32, %p33
    %p35 = scmp.ne.s32.totalorder %s27, %s30
    %p36 = scmp.eq.s32.totalorder %s17, 0
    %p37 = por %p35, %p36
    %p38 = scmp.ne.s32.totalorder %s27, %s30
    %p39 = scmp.eq.s32.totalorder %s22, 1
    %p40 = por %p38, %p39
    %p41 = scmp.ne.s32.totalorder %s30, %s31
    %p42 = scmp.eq.s32.totalorder %s22, 0
    %p43 = por %p41, %p42
    %p44 = scmp.ne.s32.totalorder %s30, %s31
    %p45 = scmp.eq.s32.totalorder %s23, 1
    %p46 = por %p44, %p45
    %p48 = scmp.ne.s32.totalorder %s31, %s47
    %p49 = scmp.eq.s32.totalorder %s23, 0
    %p50 = por %p48, %p49
    %s52 = sadd.s32 %s51, 1
    %p55 = scmp.eq.s32.totalorder %s17, 1
    %p56 = scmp.ne.s32.totalorder %s51, %s53
    %p57 = scmp.eq.s32.totalorder %s17, 0
    %p58 = por %p56, %p57
    %p59 = scmp.ne.s32.totalorder %s51, %s53
    %p60 = scmp.eq.s32.totalorder %s22, 1
    %p61 = por %p59, %p60
    %p62 = scmp.ne.s32.totalorder %s53, %s54
    %p63 = scmp.eq.s32.totalorder %s22, 0
    %p64 = por %p62, %p63
    %p65 = scmp.ne.s32.totalorder %s53, %s54
    %p66 = scmp.eq.s32.totalorder %s23, 1
    %p67 = por %p65, %p66
    %p69 = scmp.ne.s32.totalorder %s54, %s68
    %p70 = scmp.eq.s32.totalorder %s23, 0
    %p71 = por %p69, %p70
    %s73 = sadd.s32 %s72, 1
    %p76 = scmp.eq.s32.totalorder %s17, 1
    %p77 = scmp.ne.s32.totalorder %s72, %s74
    %p78 = scmp.eq.s32.totalorder %s17, 0
    %p79 = por %p77, %p78
    %p80 = scmp.ne.s32.totalorder %s72, %s74
    %p81 = scmp.eq.s32.totalorder %s22, 1
    %p82 = por %p80, %p81
    %p83 = scmp.ne.s32.totalorder %s74, %s75
    %p84 = scmp.eq.s32.totalorder %s22, 0
    %p85 = por %p83, %p84
    %p86 = scmp.ne.s32.totalorder %s74, %s75
    %p87 = scmp.eq.s32.totalorder %s23, 1
    %p88 = por %p86, %p87
    %p90 = scmp.ne.s32.totalorder %s75, %s89
    %p91 = scmp.eq.s32.totalorder %s23, 0
    %p92 = por %p90, %p91
    %s94 = sadd.s32 %s93, 1
    %p97 = scmp.eq.s32.totalorder %s17, 1
    %p98 = scmp.ne.s32.totalorder %s93, %s95
    %p99 = scmp.eq.s32.totalorder %s17, 0
    %p100 = por %p98, %p99
    %p101 = scmp.ne.s32.totalorder %s93, %s95
    %p102 = scmp.eq.s32.totalorder %s22, 1
    %p103 = por %p101, %p102
    %p104 = scmp.ne.s32.totalorder %s95, %s96
    %p105 = scmp.eq.s32.totalorder %s22, 0
    %p106 = por %p104, %p105
    %p107 = scmp.ne.s32.totalorder %s95, %s96
    %p108 = scmp.eq.s32.totalorder %s23, 1
    %p109 = por %p107, %p108
    %p111 = scmp.ne.s32.totalorder %s96, %s110
    %p112 = scmp.eq.s32.totalorder %s23, 0
    %p113 = por %p111, %p112
    %s115 = sadd.s32 %s114, 1
    %p118 = scmp.eq.s32.totalorder %s17, 1
    %p119 = scmp.ne.s32.totalorder %s114, %s116
    %p120 = scmp.eq.s32.totalorder %s17, 0
    %p121 = por %p119, %p120
    %p122 = scmp.ne.s32.totalorder %s114, %s116
    %p123 = scmp.eq.s32.totalorder %s22, 1
    %p124 = por %p122, %p123
    %p125 = scmp.ne.s32.totalorder %s116, %s117
    %p126 = scmp.eq.s32.totalorder %s22, 0
    %p127 = por %p125, %p126
    %p128 = scmp.ne.s32.totalorder %s116, %s117
    %p129 = scmp.eq.s32.totalorder %s23, 1
    %p130 = por %p128, %p129
    %p132 = scmp.ne.s32.totalorder %s117, %s131
    %p133 = scmp.eq.s32.totalorder %s23, 0
    %p134 = por %p132, %p133
    %s136 = sadd.s32 %s135, 1
    %p139 = scmp.eq.s32.totalorder %s17, 1
    %p140 = scmp.ne.s32.totalorder %s135, %s137
    %p141 = scmp.eq.s32.totalorder %s17, 0
    %p142 = por %p140, %p141
    %p143 = scmp.ne.s32.totalorder %s135, %s137
    %p144 = scmp.eq.s32.totalorder %s22, 1
    %p145 = por %p143, %p144
    %p146 = scmp.ne.s32.totalorder %s137, %s138
    %p147 = scmp.eq.s32.totalorder %s22, 0
    %p148 = por %p146, %p147
    %p149 = scmp.ne.s32.totalorder %s137, %s138
    %p150 = scmp.eq.s32.totalorder %s23, 1
    %p151 = por %p149, %p150
    %p153 = scmp.ne.s32.totalorder %s138, %s152
    %p154 = scmp.eq.s32.totalorder %s23, 0
    %p155 = por %p153, %p154
    %s157 = sadd.s32 %s156, 1
    %p160 = scmp.eq.s32.totalorder %s17, 1
    %p161 = scmp.ne.s32.totalorder %s156, %s158
    %p162 = scmp.eq.s32.totalorder %s17, 0
    %p163 = por %p161, %p162
    %p164 = scmp.ne.s32.totalorder %s156, %s158
    %p165 = scmp.eq.s32.totalorder %s22, 1
    %p166 = por %p164, %p165
    %p167 = scmp.ne.s32.totalorder %s158, %s159
    %p168 = scmp.eq.s32.totalorder %s22, 0
    %p169 = por %p167, %p168
    %p170 = scmp.ne.s32.totalorder %s158, %s159
    %p171 = scmp.eq.s32.totalorder %s23, 1
    %p172 = por %p170, %p171
    %p174 = scmp.ne.s32.totalorder %s159, %s173
    %p175 = scmp.eq.s32.totalorder %s23, 0
    %p176 = por %p174, %p175
    %s178 = sadd.s32 %s177, 1
    %p181 = scmp.eq.s32.totalorder %s17, 1
    %p182 = scmp.ne.s32.totalorder %s177, %s179
    %p183 = scmp.eq.s32.totalorder %s17, 0
    %p184 = por %p182, %p183
    %p185 = scmp.ne.s32.totalorder %s177, %s179
    %p186 = scmp.eq.s32.totalorder %s22, 1
    %p187 = por %p185, %p186
    %p188 = scmp.ne.s32.totalorder %s179, %s180
    %p189 = scmp.eq.s32.totalorder %s22, 0
    %p190 = por %p188, %p189
    %p191 = scmp.ne.s32.totalorder %s179, %s180
    %p192 = scmp.eq.s32.totalorder %s23, 1
    %p193 = por %p191, %p192
    %p195 = scmp.ne.s32.totalorder %s180, %s194
    %p196 = scmp.eq.s32.totalorder %s23, 0
    %p197 = por %p195, %p196
    %s199 = sadd.s32 %s198, 1
    %p202 = scmp.eq.s32.totalorder %s17, 1
    %p203 = scmp.ne.s32.totalorder %s198, %s200
    %p204 = scmp.eq.s32.totalorder %s17, 0
    %p205 = por %p203, %p204
    %p206 = scmp.ne.s32.totalorder %s198, %s200
    %p207 = scmp.eq.s32.totalorder %s22, 1
    %p208 = por %p206, %p207
    %p209 = scmp.ne.s32.totalorder %s200, %s201
    %p210 = scmp.eq.s32.totalorder %s22, 0
    %p211 = por %p209, %p210
    %p212 = scmp.ne.s32.totalorder %s200, %s201
    %p213 = scmp.eq.s32.totalorder %s23, 1
    %p214 = por %p212, %p213
    %p216 = scmp.ne.s32.totalorder %s201, %s215
    %p217 = scmp.eq.s32.totalorder %s23, 0
    %p218 = por %p216, %p217
    %s220 = sadd.s32 %s219, 1
    %p223 = scmp.eq.s32.totalorder %s17, 1
    %p224 = scmp.ne.s32.totalorder %s219, %s221
    %p225 = scmp.eq.s32.totalorder %s17, 0
    %p226 = por %p224, %p225
    %p227 = scmp.ne.s32.totalorder %s219, %s221
    %p228 = scmp.eq.s32.totalorder %s22, 1
    %p229 = por %p227, %p228
    %p230 = scmp.ne.s32.totalorder %s221, %s222
    %p231 = scmp.eq.s32.totalorder %s22, 0
    %p232 = por %p230, %p231
    %p233 = scmp.ne.s32.totalorder %s221, %s222
    %p234 = scmp.eq.s32.totalorder %s23, 1
    %p235 = por %p233, %p234
    %p237 = scmp.ne.s32.totalorder %s222, %s236
    %p238 = scmp.eq.s32.totalorder %s23, 0
    %p239 = por %p237, %p238
    %s241 = sadd.s32 %s240, 1
    %p244 = scmp.eq.s32.totalorder %s17, 1
    %p245 = scmp.ne.s32.totalorder %s240, %s242
    %p246 = scmp.eq.s32.totalorder %s17, 0
    %p247 = por %p245, %p246
    %p248 = scmp.ne.s32.totalorder %s240, %s242
    %p249 = scmp.eq.s32.totalorder %s22, 1
    %p250 = por %p248, %p249
    %p251 = scmp.ne.s32.totalorder %s242, %s243
    %p252 = scmp.eq.s32.totalorder %s22, 0
    %p253 = por %p251, %p252
    %p254 = scmp.ne.s32.totalorder %s242, %s243
    %p255 = scmp.eq.s32.totalorder %s23, 1
    %p256 = por %p254, %p255
    %p258 = scmp.ne.s32.totalorder %s243, %s257
    %p259 = scmp.eq.s32.totalorder %s23, 0
    %p260 = por %p258, %p259
    %s261 = ssub.s32 %s17, %s24
    %p262 = scmp.eq.s32.totalorder %s261, 0
    %s264 = sadd.s32 %s263, 1
    %s265 = scalar_select %p262, %s263, %s264
    %p268 = pneg %p262
    %p269 = scmp.eq.s32.totalorder %s17, 1
    %p270 = por %p268, %p269
    %p271 = scmp.ne.s32.totalorder %s263, %s266
    %p272 = scmp.eq.s32.totalorder %s17, 0
    %p273 = por %p271, %p272
    %p274 = scmp.ne.s32.totalorder %s263, %s266
    %p275 = scmp.eq.s32.totalorder %s22, 1
    %p276 = por %p274, %p275
    %p277 = scmp.ne.s32.totalorder %s266, %s267
    %p278 = scmp.eq.s32.totalorder %s22, 0
    %p279 = por %p277, %p278
    %p280 = scmp.ne.s32.totalorder %s266, %s267
    %p281 = scmp.eq.s32.totalorder %s23, 1
    %p282 = por %p280, %p281
    %p284 = scmp.ne.s32.totalorder %s267, %s283
    %p285 = scmp.eq.s32.totalorder %s23, 0
    %p286 = por %p284, %p285
    %p287 = scmp.le.s32.totalorder 1, %s17
    %p288 = scmp.lt.s32.totalorder %s17, 3
    %p289 = pnand %p287, %p288
    %p290 = pneg %p289
    // Predicated region
    $region9: #{ca_layer.1} parent=5 // pred_check
      _
    $region10: #{ca_layer.1} parent=5 // pred_check_branch
      %292 = sbr.rel (%p289) target = $region12
    $region11: #{ca_layer.1} parent=5 // pred_region
      %s293 = ssub.s32 %s17, 1
      // Predicated region
      $region13: #{ca_layer.1} parent=11 // pred_check
        %p294 = pneg %p64
      $region14: #{ca_layer.1} parent=11 // pred_check_branch
        %296 = sbr.rel (%p294) target = $region16
      $region15: #{ca_layer.1} parent=11 // pred_region
        _
      $region16: #{ca_layer.1} parent=11 // pred_fallthru
        _
      // Predicated region
      $region17: #{ca_layer.1} parent=11 // pred_check
        %p297 = pneg %p85
      $region18: #{ca_layer.1} parent=11 // pred_check_branch
        %299 = sbr.rel (%p297) target = $region20
      $region19: #{ca_layer.1} parent=11 // pred_region
        _
      $region20: #{ca_layer.1} parent=11 // pred_fallthru
        _
      // Predicated region
      $region21: #{ca_layer.1} parent=11 // pred_check
        %p300 = pneg %p106
      $region22: #{ca_layer.1} parent=11 // pred_check_branch
        %302 = sbr.rel (%p300) target = $region24
      $region23: #{ca_layer.1} parent=11 // pred_region
        _
      $region24: #{ca_layer.1} parent=11 // pred_fallthru
        _
      // Predicated region
      $region25: #{ca_layer.1} parent=11 // pred_check
        %p303 = pneg %p127
      $region26: #{ca_layer.1} parent=11 // pred_check_branch
        %305 = sbr.rel (%p303) target = $region28
      $region27: #{ca_layer.1} parent=11 // pred_region
        _
      $region28: #{ca_layer.1} parent=11 // pred_fallthru
        _
      // Predicated region
      $region29: #{ca_layer.1} parent=11 // pred_check
        %p306 = pneg %p148
      $region30: #{ca_layer.1} parent=11 // pred_check_branch
        %308 = sbr.rel (%p306) target = $region32
      $region31: #{ca_layer.1} parent=11 // pred_region
        _
      $region32: #{ca_layer.1} parent=11 // pred_fallthru
        _
      // Predicated region
      $region33: #{ca_layer.1} parent=11 // pred_check
        %p309 = pneg %p169
      $region34: #{ca_layer.1} parent=11 // pred_check_branch
        %311 = sbr.rel (%p309) target = $region36
      $region35: #{ca_layer.1} parent=11 // pred_region
        _
      $region36: #{ca_layer.1} parent=11 // pred_fallthru
        _
      // Predicated region
      $region37: #{ca_layer.1} parent=11 // pred_check
        %p312 = pneg %p190
      $region38: #{ca_layer.1} parent=11 // pred_check_branch
        %314 = sbr.rel (%p312) target = $region40
      $region39: #{ca_layer.1} parent=11 // pred_region
        _
      $region40: #{ca_layer.1} parent=11 // pred_fallthru
        _
      // Predicated region
      $region41: #{ca_layer.1} parent=11 // pred_check
        %p315 = pneg %p211
      $region42: #{ca_layer.1} parent=11 // pred_check_branch
        %317 = sbr.rel (%p315) target = $region44
      $region43: #{ca_layer.1} parent=11 // pred_region
        _
      $region44: #{ca_layer.1} parent=11 // pred_fallthru
        _
      // Predicated region
      $region45: #{ca_layer.1} parent=11 // pred_check
        %p318 = pneg %p232
      $region46: #{ca_layer.1} parent=11 // pred_check_branch
        %320 = sbr.rel (%p318) target = $region48
      $region47: #{ca_layer.1} parent=11 // pred_region
        _
      $region48: #{ca_layer.1} parent=11 // pred_fallthru
        _
      // Predicated region
      $region49: #{ca_layer.1} parent=11 // pred_check
        %p321 = pneg %p253
      $region50: #{ca_layer.1} parent=11 // pred_check_branch
        %323 = sbr.rel (%p321) target = $region52
      $region51: #{ca_layer.1} parent=11 // pred_region
        _
      $region52: #{ca_layer.1} parent=11 // pred_fallthru
        _
    $region12: #{ca_layer.1} parent=5 // pred_fallthru
      _
    %p324 = scmp.lt.s32.totalorder %s17, 2
    // Predicated region
    $region53: #{ca_layer.1} parent=5 // pred_check
      %p325 = pneg %p324
    $region54: #{ca_layer.1} parent=5 // pred_check_branch
      %327 = sbr.rel (%p325) target = $region56
    $region55: #{ca_layer.1} parent=5 // pred_region
      // Predicated region
      $region57: #{ca_layer.1} parent=55 // pred_check
        %p328 = pneg %p37
      $region58: #{ca_layer.1} parent=55 // pred_check_branch
        %330 = sbr.rel (%p328) target = $region60
      $region59: #{ca_layer.1} parent=55 // pred_region
        %p331 = scmp.lt.s32.totalorder %s17, 1
        %s332 = scalar_select %p331, %s17, 1
        %s333 = smul.addr %s332, 16
        %s334 = smul.addr %s333, 8
        %s335 = scalar_lea.vmem %s0, %s334
      $region60: #{ca_layer.1} parent=55 // pred_fallthru
        _
    $region56: #{ca_layer.1} parent=5 // pred_fallthru
      _
    %p336 = scmp.le.s32.totalorder 1, %s17
    %p337 = scmp.lt.s32.totalorder %s17, 3
    %p338 = pnand %p336, %p337
    %p339 = pneg %p338
    // Predicated region
    $region61: #{ca_layer.1} parent=5 // pred_check
      _
    $region62: #{ca_layer.1} parent=5 // pred_check_branch
      %341 = sbr.rel (%p338) target = $region64
    $region63: #{ca_layer.1} parent=5 // pred_region
      %s342 = ssub.s32 %s17, 1
      %p343 = scmp.lt.s32.totalorder %s22, 1
      %s344 = scalar_select %p343, %s22, 1
      %s345 = smul.addr %s344, 16
      %s346 = smul.addr %s345, 8
      %s347 = scalar_lea.vmem %s0, %s346
      %p348 = pneg %p43
      %p349 = pneg %p40
      %p350 = pneg %p64
      %p351 = pneg %p61
      %p352 = pneg %p85
      %p353 = pneg %p82
      %p354 = pneg %p106
      %p355 = pneg %p103
      %p356 = pneg %p127
      %p357 = pneg %p124
      %p358 = pneg %p148
      %p359 = pneg %p145
      %p360 = pneg %p169
      %p361 = pneg %p166
      %p362 = pneg %p190
      %p363 = pneg %p187
      %p364 = pneg %p211
      %p365 = pneg %p208
      %p366 = pneg %p232
      %p367 = pneg %p229
      %p368 = pneg %p253
      %p369 = pneg %p250
      %p370 = pneg %p279
      %p371 = pneg %p276
      %p372 = scmp.lt.s32.totalorder %s22, 1
      %s373 = scalar_select %p372, %s22, 1
      %s374 = smul.addr %s373, 16
      %s375 = smul.addr %s374, 8
      %s376 = scalar_lea.vmem %s11, %s375
      %p377 = scmp.lt.s32.totalorder %s22, 1
      %s378 = scalar_select %p377, %s22, 1
      %s379 = smul.addr %s378, 16
      %s380 = smul.addr %s379, 8
      %s381 = scalar_lea.vmem %s0, %s380
      %p382 = scmp.lt.s32.totalorder %s22, 1
      %s383 = scalar_select %p382, %s22, 1
      %s384 = smul.addr %s383, 16
      %s385 = smul.addr %s384, 8
      %s386 = scalar_lea.vmem %s11, %s385
      %v387 = vld [vmem:[%s381] sm:$0xff]
      %v388 = vld [vmem:[%s381 + $0x8] sm:$0xff]
      %v389 = vld [vmem:[%s381 + $0x10] sm:$0xff]
      %v390 = vld [vmem:[%s381 + $0x18] sm:$0xff]
      %v391 = vld [vmem:[%s381 + $0x20] sm:$0xff]
      %v392 = vld [vmem:[%s381 + $0x28] sm:$0xff]
      %v393 = vld [vmem:[%s381 + $0x30] sm:$0xff]
      %v394 = vld [vmem:[%s381 + $0x38] sm:$0xff]
      %v395 = vld [vmem:[%s381 + $0x40] sm:$0xff]
      %v396 = vld [vmem:[%s381 + $0x48] sm:$0xff]
      %v397 = vld [vmem:[%s381 + $0x50] sm:$0xff]
      %v398 = vld [vmem:[%s381 + $0x58] sm:$0xff]
      %v399 = vld [vmem:[%s381 + $0x60] sm:$0xff]
      %v400 = vld [vmem:[%s381 + $0x68] sm:$0xff]
      %v401 = vld [vmem:[%s381 + $0x70] sm:$0xff]
      %v402 = vld [vmem:[%s381 + $0x78] sm:$0xff]
      %v403 = vld [vmem:[%s1] sm:$0xff]
      %v404 = vld [vmem:[%s1 + $0x8] sm:$0xff]
      %v405 = vld [vmem:[%s1 + $0x10] sm:$0xff]
      %v406 = vld [vmem:[%s1 + $0x18] sm:$0xff]
      %v407 = vld [vmem:[%s1 + $0x20] sm:$0xff]
      %v408 = vld [vmem:[%s1 + $0x28] sm:$0xff]
      %v409 = vld [vmem:[%s1 + $0x30] sm:$0xff]
      %v410 = vld [vmem:[%s1 + $0x38] sm:$0xff]
      %v411 = vld [vmem:[%s1 + $0x40] sm:$0xff]
      %v412 = vld [vmem:[%s1 + $0x48] sm:$0xff]
      %v413 = vld [vmem:[%s1 + $0x50] sm:$0xff]
      %v414 = vld [vmem:[%s1 + $0x58] sm:$0xff]
      %v415 = vld [vmem:[%s1 + $0x60] sm:$0xff]
      %v416 = vld [vmem:[%s1 + $0x68] sm:$0xff]
      %v417 = vld [vmem:[%s1 + $0x70] sm:$0xff]
      %v418 = vld [vmem:[%s1 + $0x78] sm:$0xff]
      %v419 = vld [vmem:[%s1 + $0x80] sm:$0xff]
      %v420 = vld [vmem:[%s1 + $0x88] sm:$0xff]
      %v421 = vld [vmem:[%s1 + $0x90] sm:$0xff]
      %v422 = vld [vmem:[%s1 + $0x98] sm:$0xff]
      %v423 = vld [vmem:[%s1 + $0xa0] sm:$0xff]
      %v424 = vld [vmem:[%s1 + $0xa8] sm:$0xff]
      %v425 = vld [vmem:[%s1 + $0xb0] sm:$0xff]
      %v426 = vld [vmem:[%s1 + $0xb8] sm:$0xff]
      %v427 = vld [vmem:[%s1 + $0xc0] sm:$0xff]
      %v428 = vld [vmem:[%s1 + $0xc8] sm:$0xff]
      %v429 = vld [vmem:[%s1 + $0xd0] sm:$0xff]
      %v430 = vld [vmem:[%s1 + $0xd8] sm:$0xff]
      %v431 = vld [vmem:[%s1 + $0xe0] sm:$0xff]
      %v432 = vld [vmem:[%s1 + $0xe8] sm:$0xff]
      %v433 = vld [vmem:[%s1 + $0xf0] sm:$0xff]
      %v434 = vld [vmem:[%s1 + $0xf8] sm:$0xff]
      %435 = vmatpush.msra.mxu0 %v418
      %436 = vmatpush.msra.mxu0 %v417
      %437 = vmatpush.msra.mxu0 %v416
      %438 = vmatpush.msra.mxu0 %v415
      %439 = vmatpush.msra.mxu0 %v414
      %440 = vmatpush.msra.mxu0 %v413
      %441 = vmatpush.msra.mxu0 %v412
      %442 = vmatpush.msra.mxu0 %v411
      %443 = vmatpush.msra.mxu0 %v410
      %444 = vmatpush.msra.mxu0 %v409
      %445 = vmatpush.msra.mxu0 %v408
      %446 = vmatpush.msra.mxu0 %v407
      %447 = vmatpush.msra.mxu0 %v406
      %448 = vmatpush.msra.mxu0 %v405
      %449 = vmatpush.msra.mxu0 %v404
      %450 = vmatpush.msra.mxu0 %v403
      %451 = vmatmul.f32.gmra.mxu0 %v387
      %v452 = vpop.f32.mrf.mxu0
      %v453 = vadd.f32 0.0, %v452
      %454 = vmatmul.f32.gmra.mxu0 %v389
      %v455 = vpop.f32.mrf.mxu0
      %v456 = vadd.f32 0.0, %v455
      %457 = vmatmul.f32.gmra.mxu0 %v391
      %v458 = vpop.f32.mrf.mxu0
      %v459 = vadd.f32 0.0, %v458
      %460 = vmatmul.f32.gmra.mxu0 %v393
      %v461 = vpop.f32.mrf.mxu0
      %v462 = vadd.f32 0.0, %v461
      %463 = vmatmul.f32.gmra.mxu0 %v395
      %v464 = vpop.f32.mrf.mxu0
      %v465 = vadd.f32 0.0, %v464
      %466 = vmatmul.f32.gmra.mxu0 %v397
      %v467 = vpop.f32.mrf.mxu0
      %v468 = vadd.f32 0.0, %v467
      %469 = vmatmul.f32.gmra.mxu0 %v399
      %v470 = vpop.f32.mrf.mxu0
      %v471 = vadd.f32 0.0, %v470
      %472 = vmatmul.f32.gmra.mxu0 %v401
      %v473 = vpop.f32.mrf.mxu0
      %v474 = vadd.f32 0.0, %v473
      %475 = vdwg.mxu0
      %476 = vmatpush.msra.mxu0 %v434
      %477 = vmatpush.msra.mxu0 %v433
      %478 = vmatpush.msra.mxu0 %v432
      %479 = vmatpush.msra.mxu0 %v431
      %480 = vmatpush.msra.mxu0 %v430
      %481 = vmatpush.msra.mxu0 %v429
      %482 = vmatpush.msra.mxu0 %v428
      %483 = vmatpush.msra.mxu0 %v427
      %484 = vmatpush.msra.mxu0 %v426
      %485 = vmatpush.msra.mxu0 %v425
      %486 = vmatpush.msra.mxu0 %v424
      %487 = vmatpush.msra.mxu0 %v423
      %488 = vmatpush.msra.mxu0 %v422
      %489 = vmatpush.msra.mxu0 %v421
      %490 = vmatpush.msra.mxu0 %v420
      %491 = vmatpush.msra.mxu0 %v419
      %492 = vmatmul.f32.gmra.mxu0 %v388
      %v493 = vpop.f32.mrf.mxu0
      %v494 = vadd.f32 %v453, %v493
      %495 = vmatmul.f32.gmra.mxu0 %v390
      %v496 = vpop.f32.mrf.mxu0
      %v497 = vadd.f32 %v456, %v496
      %498 = vmatmul.f32.gmra.mxu0 %v392
      %v499 = vpop.f32.mrf.mxu0
      %v500 = vadd.f32 %v459, %v499
      %501 = vmatmul.f32.gmra.mxu0 %v394
      %v502 = vpop.f32.mrf.mxu0
      %v503 = vadd.f32 %v462, %v502
      %504 = vmatmul.f32.gmra.mxu0 %v396
      %v505 = vpop.f32.mrf.mxu0
      %v506 = vadd.f32 %v465, %v505
      %507 = vmatmul.f32.gmra.mxu0 %v398
      %v508 = vpop.f32.mrf.mxu0
      %v509 = vadd.f32 %v468, %v508
      %510 = vmatmul.f32.gmra.mxu0 %v400
      %v511 = vpop.f32.mrf.mxu0
      %v512 = vadd.f32 %v471, %v511
      %513 = vmatmul.f32.gmra.mxu0 %v402
      %v514 = vpop.f32.mrf.mxu0
      %v515 = vadd.f32 %v474, %v514
      %516 = vdwg.mxu0
      %v517 = vld [vmem:[%s2] sm:$0xff]
      %vm518 = vcmask 523264
      %v520 = vsel %vm518, %v517, 0
      %522 = vmatpush.msra.mxu0 0.0
      %523 = vmatpush.msra.mxu0 0.0
      %524 = vmatpush.msra.mxu0 0.0
      %525 = vmatpush.msra.mxu0 0.0
      %526 = vmatpush.msra.mxu0 0.0
      %527 = vmatpush.msra.mxu0 0.0
      %528 = vmatpush.msra.mxu0 0.0
      %529 = vmatpush.msra.mxu0 0.0
      %530 = vmatpush.msra.mxu0 %v515
      %531 = vmatpush.msra.mxu0 %v512
      %532 = vmatpush.msra.mxu0 %v509
      %533 = vmatpush.msra.mxu0 %v506
      %534 = vmatpush.msra.mxu0 %v503
      %535 = vmatpush.msra.mxu0 %v500
      %536 = vmatpush.msra.mxu0 %v497
      %537 = vmatpush.msra.mxu0 %v494
      %538 = vmatmul.f32.gmra.mxu0 %v520
      %v539 = vpop.f32.mrf.mxu0
      %v540 = vadd.f32 0.0, %v539
      %541 = vdwg.mxu0
      %v542 = vld [vmem:[%s3] sm:$0xff]
      %544 = vset.pattern.permute.xlu0 0
      %545 = vperm.xlu0 %544, %v542
      %v546 = vpop.permute.xlu0 %545
      %v548 = vmul.f32 %v540, %v546
      %v549 = vld [vmem:[%s4] sm:$0xff]
      %551 = vset.pattern.permute.xlu0 0
      %552 = vperm.xlu0 %551, %v549
      %v553 = vpop.permute.xlu0 %552
      %v555 = vadd.f32 %v548, %v553
      %v556 = vadd.f32 %v555, 3.0
      %v557 = vmax.f32 %v556, 0.0
      %v558 = vmin.f32 %v557, 6.0
      %v559 = vmul.f32 %v555, %v558
      %v560 = vmul.f32 %v559, 0.16666667
      %v561 = vld [vmem:[%s5] sm:$0xff]
      %v562 = vld [vmem:[%s5 + $0x8] sm:$0xff]
      %v563 = vld [vmem:[%s5 + $0x10] sm:$0xff]
      %v564 = vld [vmem:[%s5 + $0x18] sm:$0xff]
      %v565 = vld [vmem:[%s5 + $0x20] sm:$0xff]
      %v566 = vld [vmem:[%s5 + $0x28] sm:$0xff]
      %v567 = vld [vmem:[%s5 + $0x30] sm:$0xff]
      %v568 = vld [vmem:[%s5 + $0x38] sm:$0xff]
      %v569 = vld [vmem:[%s6] sm:$0xff]
      %v570 = vld [vmem:[%s6 + $0x8] sm:$0xff]
      %v571 = vld [vmem:[%s6 + $0x10] sm:$0xff]
      %v572 = vld [vmem:[%s6 + $0x18] sm:$0xff]
      %v573 = vld [vmem:[%s6 + $0x20] sm:$0xff]
      %v574 = vld [vmem:[%s6 + $0x28] sm:$0xff]
      %v575 = vld [vmem:[%s6 + $0x30] sm:$0xff]
      %v576 = vld [vmem:[%s6 + $0x38] sm:$0xff]
      %578 = vset.pattern.permute.xlu0 0
      %579 = vperm.xlu0 %578, %v569
      %v580 = vpop.permute.xlu0 %579
      %583 = vset.pattern.permute.xlu0 0
      %584 = vperm.xlu0 %583, %v570
      %v585 = vpop.permute.xlu0 %584
      %588 = vset.pattern.permute.xlu0 0
      %589 = vperm.xlu0 %588, %v571
      %v590 = vpop.permute.xlu0 %589
      %593 = vset.pattern.permute.xlu0 0
      %594 = vperm.xlu0 %593, %v572
      %v595 = vpop.permute.xlu0 %594
      %598 = vset.pattern.permute.xlu0 0
      %599 = vperm.xlu0 %598, %v573
      %v600 = vpop.permute.xlu0 %599
      %603 = vset.pattern.permute.xlu0 0
      %604 = vperm.xlu0 %603, %v574
      %v605 = vpop.permute.xlu0 %604
      %608 = vset.pattern.permute.xlu0 0
      %609 = vperm.xlu0 %608, %v575
      %v610 = vpop.permute.xlu0 %609
      %613 = vset.pattern.permute.xlu0 0
      %614 = vperm.xlu0 %613, %v576
      %v615 = vpop.permute.xlu0 %614
      %vm617 = vcmask 64512
      %v619 = vsel %vm617, %v561, 0
      %v622 = vsel %vm617, %v562, 0
      %v625 = vsel %vm617, %v563, 0
      %v628 = vsel %vm617, %v564, 0
      %v631 = vsel %vm617, %v565, 0
      %v634 = vsel %vm617, %v566, 0
      %v637 = vsel %vm617, %v567, 0
      %v640 = vsel %vm617, %v568, 0
      %642 = vmatpush.msra.mxu0 0.0
      %643 = vmatpush.msra.mxu0 0.0
      %644 = vmatpush.msra.mxu0 0.0
      %645 = vmatpush.msra.mxu0 0.0
      %646 = vmatpush.msra.mxu0 0.0
      %647 = vmatpush.msra.mxu0 0.0
      %648 = vmatpush.msra.mxu0 0.0
      %649 = vmatpush.msra.mxu0 0.0
      %650 = vmatpush.msra.mxu0 0.0
      %651 = vmatpush.msra.mxu0 0.0
      %652 = vmatpush.msra.mxu0 0.0
      %653 = vmatpush.msra.mxu0 0.0
      %654 = vmatpush.msra.mxu0 0.0
      %655 = vmatpush.msra.mxu0 0.0
      %656 = vmatpush.msra.mxu0 0.0
      %657 = vmatpush.msra.mxu0 %v560
      %658 = vmatmul.f32.gmra.mxu0 %v619
      %v659 = vpop.f32.mrf.mxu0
      %v660 = vadd.f32 %v580, %v659
      %661 = vmatmul.f32.gmra.mxu0 %v622
      %v662 = vpop.f32.mrf.mxu0
      %v663 = vadd.f32 %v585, %v662
      %664 = vmatmul.f32.gmra.mxu0 %v625
      %v665 = vpop.f32.mrf.mxu0
      %v666 = vadd.f32 %v590, %v665
      %667 = vmatmul.f32.gmra.mxu0 %v628
      %v668 = vpop.f32.mrf.mxu0
      %v669 = vadd.f32 %v595, %v668
      %670 = vmatmul.f32.gmra.mxu0 %v631
      %v671 = vpop.f32.mrf.mxu0
      %v672 = vadd.f32 %v600, %v671
      %673 = vmatmul.f32.gmra.mxu0 %v634
      %v674 = vpop.f32.mrf.mxu0
      %v675 = vadd.f32 %v605, %v674
      %676 = vmatmul.f32.gmra.mxu0 %v637
      %v677 = vpop.f32.mrf.mxu0
      %v678 = vadd.f32 %v610, %v677
      %679 = vmatmul.f32.gmra.mxu0 %v640
      %v680 = vpop.f32.mrf.mxu0
      %v681 = vadd.f32 %v615, %v680
      %682 = vdwg.mxu0
      %v683 = vld [vmem:[%s7] sm:$0xff]
      %v684 = vld [vmem:[%s7 + $0x8] sm:$0xff]
      %v685 = vld [vmem:[%s7 + $0x10] sm:$0xff]
      %v686 = vld [vmem:[%s7 + $0x18] sm:$0xff]
      %v687 = vld [vmem:[%s7 + $0x20] sm:$0xff]
      %v688 = vld [vmem:[%s7 + $0x28] sm:$0xff]
      %v689 = vld [vmem:[%s7 + $0x30] sm:$0xff]
      %v690 = vld [vmem:[%s7 + $0x38] sm:$0xff]
      %v691 = vld [vmem:[%s8] sm:$0xff]
      %v692 = vld [vmem:[%s8 + $0x8] sm:$0xff]
      %v693 = vld [vmem:[%s8 + $0x10] sm:$0xff]
      %v694 = vld [vmem:[%s8 + $0x18] sm:$0xff]
      %v695 = vld [vmem:[%s8 + $0x20] sm:$0xff]
      %v696 = vld [vmem:[%s8 + $0x28] sm:$0xff]
      %v697 = vld [vmem:[%s8 + $0x30] sm:$0xff]
      %v698 = vld [vmem:[%s8 + $0x38] sm:$0xff]
      %700 = vset.pattern.permute.xlu0 0
      %701 = vperm.xlu0 %700, %v691
      %v702 = vpop.permute.xlu0 %701
      %705 = vset.pattern.permute.xlu0 0
      %706 = vperm.xlu0 %705, %v692
      %v707 = vpop.permute.xlu0 %706
      %710 = vset.pattern.permute.xlu0 0
      %711 = vperm.xlu0 %710, %v693
      %v712 = vpop.permute.xlu0 %711
      %715 = vset.pattern.permute.xlu0 0
      %716 = vperm.xlu0 %715, %v694
      %v717 = vpop.permute.xlu0 %716
      %720 = vset.pattern.permute.xlu0 0
      %721 = vperm.xlu0 %720, %v695
      %v722 = vpop.permute.xlu0 %721
      %725 = vset.pattern.permute.xlu0 0
      %726 = vperm.xlu0 %725, %v696
      %v727 = vpop.permute.xlu0 %726
      %730 = vset.pattern.permute.xlu0 0
      %731 = vperm.xlu0 %730, %v697
      %v732 = vpop.permute.xlu0 %731
      %735 = vset.pattern.permute.xlu0 0
      %736 = vperm.xlu0 %735, %v698
      %v737 = vpop.permute.xlu0 %736
      %740 = vrot.lane.b32.xlu0 %v560, 112
      %v741 = vpop.permute.xlu0 %740
      %v744 = vsel %vm617, %v683, 0
      %v747 = vsel %vm617, %v684, 0
      %v750 = vsel %vm617, %v685, 0
      %v753 = vsel %vm617, %v686, 0
      %v756 = vsel %vm617, %v687, 0
      %v759 = vsel %vm617, %v688, 0
      %v762 = vsel %vm617, %v689, 0
      %v765 = vsel %vm617, %v690, 0
      %767 = vmatpush.msra.mxu0 0.0
      %768 = vmatpush.msra.mxu0 0.0
      %769 = vmatpush.msra.mxu0 0.0
      %770 = vmatpush.msra.mxu0 0.0
      %771 = vmatpush.msra.mxu0 0.0
      %772 = vmatpush.msra.mxu0 0.0
      %773 = vmatpush.msra.mxu0 0.0
      %774 = vmatpush.msra.mxu0 0.0
      %775 = vmatpush.msra.mxu0 0.0
      %776 = vmatpush.msra.mxu0 0.0
      %777 = vmatpush.msra.mxu0 0.0
      %778 = vmatpush.msra.mxu0 0.0
      %779 = vmatpush.msra.mxu0 0.0
      %780 = vmatpush.msra.mxu0 0.0
      %781 = vmatpush.msra.mxu0 0.0
      %782 = vmatpush.msra.mxu0 %v741
      %783 = vmatmul.f32.gmra.mxu0 %v744
      %v784 = vpop.f32.mrf.mxu0
      %v785 = vadd.f32 %v702, %v784
      %786 = vmatmul.f32.gmra.mxu0 %v747
      %v787 = vpop.f32.mrf.mxu0
      %v788 = vadd.f32 %v707, %v787
      %789 = vmatmul.f32.gmra.mxu0 %v750
      %v790 = vpop.f32.mrf.mxu0
      %v791 = vadd.f32 %v712, %v790
      %792 = vmatmul.f32.gmra.mxu0 %v753
      %v793 = vpop.f32.mrf.mxu0
      %v794 = vadd.f32 %v717, %v793
      %795 = vmatmul.f32.gmra.mxu0 %v756
      %v796 = vpop.f32.mrf.mxu0
      %v797 = vadd.f32 %v722, %v796
      %798 = vmatmul.f32.gmra.mxu0 %v759
      %v799 = vpop.f32.mrf.mxu0
      %v800 = vadd.f32 %v727, %v799
      %801 = vmatmul.f32.gmra.mxu0 %v762
      %v802 = vpop.f32.mrf.mxu0
      %v803 = vadd.f32 %v732, %v802
      %804 = vmatmul.f32.gmra.mxu0 %v765
      %v805 = vpop.f32.mrf.mxu0
      %v806 = vadd.f32 %v737, %v805
      %807 = vdwg.mxu0
      %v808 = vsub.f32 0.0, %v660
      %v809 = vsub.f32 0.0, %v663
      %v810 = vsub.f32 0.0, %v666
      %v811 = vsub.f32 0.0, %v669
      %v812 = vsub.f32 0.0, %v672
      %v813 = vsub.f32 0.0, %v675
      %v814 = vsub.f32 0.0, %v678
      %v815 = vsub.f32 0.0, %v681
      %v816 = vmul.f32 %v808, 1.442695
      %v817 = vpow.pop %v816
      %v818 = vmul.f32 %v809, 1.442695
      %v819 = vpow.pop %v818
      %v820 = vmul.f32 %v810, 1.442695
      %v821 = vpow.pop %v820
      %v822 = vmul.f32 %v811, 1.442695
      %v823 = vpow.pop %v822
      %v824 = vmul.f32 %v812, 1.442695
      %v825 = vpow.pop %v824
      %v826 = vmul.f32 %v813, 1.442695
      %v827 = vpow.pop %v826
      %v828 = vmul.f32 %v814, 1.442695
      %v829 = vpow.pop %v828
      %v830 = vmul.f32 %v815, 1.442695
      %v831 = vpow.pop %v830
      %v832 = vadd.f32 %v817, 1.0
      %v833 = vadd.f32 %v819, 1.0
      %v834 = vadd.f32 %v821, 1.0
      %v835 = vadd.f32 %v823, 1.0
      %v836 = vadd.f32 %v825, 1.0
      %v837 = vadd.f32 %v827, 1.0
      %v838 = vadd.f32 %v829, 1.0
      %v839 = vadd.f32 %v831, 1.0
      %v840 = vrcp.pop %v832
      %v841 = vmul.f32 %v832, %v840
      %v842 = vsub.f32 1.0, %v841
      %v843 = vmul.f32 %v840, %v842
      %v844 = vadd.f32 %v840, %v843
      %vm845 = vweird.f32 %v832
      %vm846 = vweird.f32 %v840
      %vm847 = vmor %vm845, %vm846
      %v848 = vsel %vm847, %v840, %v844
      %v849 = vand.u32 2147483647, %v832
      %vm850 = vcmp.eq.f32.partialorder %v849, 8.507059e+37
      %v851 = vand.u32 %v832, 2147483648
      %v852 = vor.u32 1.1754944e-38, %v851
      %v853 = vsel %vm850, %v852, %v848
      %v854 = vmul.f32 1.0, %v853
      %v855 = vrcp.pop %v833
      %v856 = vmul.f32 %v833, %v855
      %v857 = vsub.f32 1.0, %v856
      %v858 = vmul.f32 %v855, %v857
      %v859 = vadd.f32 %v855, %v858
      %vm860 = vweird.f32 %v833
      %vm861 = vweird.f32 %v855
      %vm862 = vmor %vm860, %vm861
      %v863 = vsel %vm862, %v855, %v859
      %v864 = vand.u32 2147483647, %v833
      %vm865 = vcmp.eq.f32.partialorder %v864, 8.507059e+37
      %v866 = vand.u32 %v833, 2147483648
      %v867 = vor.u32 1.1754944e-38, %v866
      %v868 = vsel %vm865, %v867, %v863
      %v869 = vmul.f32 1.0, %v868
      %v870 = vrcp.pop %v834
      %v871 = vmul.f32 %v834, %v870
      %v872 = vsub.f32 1.0, %v871
      %v873 = vmul.f32 %v870, %v872
      %v874 = vadd.f32 %v870, %v873
      %vm875 = vweird.f32 %v834
      %vm876 = vweird.f32 %v870
      %vm877 = vmor %vm875, %vm876
      %v878 = vsel %vm877, %v870, %v874
      %v879 = vand.u32 2147483647, %v834
      %vm880 = vcmp.eq.f32.partialorder %v879, 8.507059e+37
      %v881 = vand.u32 %v834, 2147483648
      %v882 = vor.u32 1.1754944e-38, %v881
      %v883 = vsel %vm880, %v882, %v878
      %v884 = vmul.f32 1.0, %v883
      %v885 = vrcp.pop %v835
      %v886 = vmul.f32 %v835, %v885
      %v887 = vsub.f32 1.0, %v886
      %v888 = vmul.f32 %v885, %v887
      %v889 = vadd.f32 %v885, %v888
      %vm890 = vweird.f32 %v835
      %vm891 = vweird.f32 %v885
      %vm892 = vmor %vm890, %vm891
      %v893 = vsel %vm892, %v885, %v889
      %v894 = vand.u32 2147483647, %v835
      %vm895 = vcmp.eq.f32.partialorder %v894, 8.507059e+37
      %v896 = vand.u32 %v835, 2147483648
      %v897 = vor.u32 1.1754944e-38, %v896
      %v898 = vsel %vm895, %v897, %v893
      %v899 = vmul.f32 1.0, %v898
      %v900 = vrcp.pop %v836
      %v901 = vmul.f32 %v836, %v900
      %v902 = vsub.f32 1.0, %v901
      %v903 = vmul.f32 %v900, %v902
      %v904 = vadd.f32 %v900, %v903
      %vm905 = vweird.f32 %v836
      %vm906 = vweird.f32 %v900
      %vm907 = vmor %vm905, %vm906
      %v908 = vsel %vm907, %v900, %v904
      %v909 = vand.u32 2147483647, %v836
      %vm910 = vcmp.eq.f32.partialorder %v909, 8.507059e+37
      %v911 = vand.u32 %v836, 2147483648
      %v912 = vor.u32 1.1754944e-38, %v911
      %v913 = vsel %vm910, %v912, %v908
      %v914 = vmul.f32 1.0, %v913
      %v915 = vrcp.pop %v837
      %v916 = vmul.f32 %v837, %v915
      %v917 = vsub.f32 1.0, %v916
      %v918 = vmul.f32 %v915, %v917
      %v919 = vadd.f32 %v915, %v918
      %vm920 = vweird.f32 %v837
      %vm921 = vweird.f32 %v915
      %vm922 = vmor %vm920, %vm921
      %v923 = vsel %vm922, %v915, %v919
      %v924 = vand.u32 2147483647, %v837
      %vm925 = vcmp.eq.f32.partialorder %v924, 8.507059e+37
      %v926 = vand.u32 %v837, 2147483648
      %v927 = vor.u32 1.1754944e-38, %v926
      %v928 = vsel %vm925, %v927, %v923
      %v929 = vmul.f32 1.0, %v928
      %v930 = vrcp.pop %v838
      %v931 = vmul.f32 %v838, %v930
      %v932 = vsub.f32 1.0, %v931
      %v933 = vmul.f32 %v930, %v932
      %v934 = vadd.f32 %v930, %v933
      %vm935 = vweird.f32 %v838
      %vm936 = vweird.f32 %v930
      %vm937 = vmor %vm935, %vm936
      %v938 = vsel %vm937, %v930, %v934
      %v939 = vand.u32 2147483647, %v838
      %vm940 = vcmp.eq.f32.partialorder %v939, 8.507059e+37
      %v941 = vand.u32 %v838, 2147483648
      %v942 = vor.u32 1.1754944e-38, %v941
      %v943 = vsel %vm940, %v942, %v938
      %v944 = vmul.f32 1.0, %v943
      %v945 = vrcp.pop %v839
      %v946 = vmul.f32 %v839, %v945
      %v947 = vsub.f32 1.0, %v946
      %v948 = vmul.f32 %v945, %v947
      %v949 = vadd.f32 %v945, %v948
      %vm950 = vweird.f32 %v839
      %vm951 = vweird.f32 %v945
      %vm952 = vmor %vm950, %vm951
      %v953 = vsel %vm952, %v945, %v949
      %v954 = vand.u32 2147483647, %v839
      %vm955 = vcmp.eq.f32.partialorder %v954, 8.507059e+37
      %v956 = vand.u32 %v839, 2147483648
      %v957 = vor.u32 1.1754944e-38, %v956
      %v958 = vsel %vm955, %v957, %v953
      %v959 = vmul.f32 1.0, %v958
      %v960 = vsub.f32 0.0, %v785
      %v961 = vsub.f32 0.0, %v788
      %v962 = vsub.f32 0.0, %v791
      %v963 = vsub.f32 0.0, %v794
      %v964 = vsub.f32 0.0, %v797
      %v965 = vsub.f32 0.0, %v800
      %v966 = vsub.f32 0.0, %v803
      %v967 = vsub.f32 0.0, %v806
      %v968 = vmul.f32 %v960, 1.442695
      %v969 = vpow.pop %v968
      %v970 = vmul.f32 %v961, 1.442695
      %v971 = vpow.pop %v970
      %v972 = vmul.f32 %v962, 1.442695
      %v973 = vpow.pop %v972
      %v974 = vmul.f32 %v963, 1.442695
      %v975 = vpow.pop %v974
      %v976 = vmul.f32 %v964, 1.442695
      %v977 = vpow.pop %v976
      %v978 = vmul.f32 %v965, 1.442695
      %v979 = vpow.pop %v978
      %v980 = vmul.f32 %v966, 1.442695
      %v981 = vpow.pop %v980
      %v982 = vmul.f32 %v967, 1.442695
      %v983 = vpow.pop %v982
      %v984 = vadd.f32 %v969, 1.0
      %v985 = vadd.f32 %v971, 1.0
      %v986 = vadd.f32 %v973, 1.0
      %v987 = vadd.f32 %v975, 1.0
      %v988 = vadd.f32 %v977, 1.0
      %v989 = vadd.f32 %v979, 1.0
      %v990 = vadd.f32 %v981, 1.0
      %v991 = vadd.f32 %v983, 1.0
      %v992 = vrcp.pop %v984
      %v993 = vmul.f32 %v984, %v992
      %v994 = vsub.f32 1.0, %v993
      %v995 = vmul.f32 %v992, %v994
      %v996 = vadd.f32 %v992, %v995
      %vm997 = vweird.f32 %v984
      %vm998 = vweird.f32 %v992
      %vm999 = vmor %vm997, %vm998
      %v1000 = vsel %vm999, %v992, %v996
      %v1001 = vand.u32 2147483647, %v984
      %vm1002 = vcmp.eq.f32.partialorder %v1001, 8.507059e+37
      %v1003 = vand.u32 %v984, 2147483648
      %v1004 = vor.u32 1.1754944e-38, %v1003
      %v1005 = vsel %vm1002, %v1004, %v1000
      %v1006 = vmul.f32 1.0, %v1005
      %v1007 = vrcp.pop %v985
      %v1008 = vmul.f32 %v985, %v1007
      %v1009 = vsub.f32 1.0, %v1008
      %v1010 = vmul.f32 %v1007, %v1009
      %v1011 = vadd.f32 %v1007, %v1010
      %vm1012 = vweird.f32 %v985
      %vm1013 = vweird.f32 %v1007
      %vm1014 = vmor %vm1012, %vm1013
      %v1015 = vsel %vm1014, %v1007, %v1011
      %v1016 = vand.u32 2147483647, %v985
      %vm1017 = vcmp.eq.f32.partialorder %v1016, 8.507059e+37
      %v1018 = vand.u32 %v985, 2147483648
      %v1019 = vor.u32 1.1754944e-38, %v1018
      %v1020 = vsel %vm1017, %v1019, %v1015
      %v1021 = vmul.f32 1.0, %v1020
      %v1022 = vrcp.pop %v986
      %v1023 = vmul.f32 %v986, %v1022
      %v1024 = vsub.f32 1.0, %v1023
      %v1025 = vmul.f32 %v1022, %v1024
      %v1026 = vadd.f32 %v1022, %v1025
      %vm1027 = vweird.f32 %v986
      %vm1028 = vweird.f32 %v1022
      %vm1029 = vmor %vm1027, %vm1028
      %v1030 = vsel %vm1029, %v1022, %v1026
      %v1031 = vand.u32 2147483647, %v986
      %vm1032 = vcmp.eq.f32.partialorder %v1031, 8.507059e+37
      %v1033 = vand.u32 %v986, 2147483648
      %v1034 = vor.u32 1.1754944e-38, %v1033
      %v1035 = vsel %vm1032, %v1034, %v1030
      %v1036 = vmul.f32 1.0, %v1035
      %v1037 = vrcp.pop %v987
      %v1038 = vmul.f32 %v987, %v1037
      %v1039 = vsub.f32 1.0, %v1038
      %v1040 = vmul.f32 %v1037, %v1039
      %v1041 = vadd.f32 %v1037, %v1040
      %vm1042 = vweird.f32 %v987
      %vm1043 = vweird.f32 %v1037
      %vm1044 = vmor %vm1042, %vm1043
      %v1045 = vsel %vm1044, %v1037, %v1041
      %v1046 = vand.u32 2147483647, %v987
      %vm1047 = vcmp.eq.f32.partialorder %v1046, 8.507059e+37
      %v1048 = vand.u32 %v987, 2147483648
      %v1049 = vor.u32 1.1754944e-38, %v1048
      %v1050 = vsel %vm1047, %v1049, %v1045
      %v1051 = vmul.f32 1.0, %v1050
      %v1052 = vrcp.pop %v988
      %v1053 = vmul.f32 %v988, %v1052
      %v1054 = vsub.f32 1.0, %v1053
      %v1055 = vmul.f32 %v1052, %v1054
      %v1056 = vadd.f32 %v1052, %v1055
      %vm1057 = vweird.f32 %v988
      %vm1058 = vweird.f32 %v1052
      %vm1059 = vmor %vm1057, %vm1058
      %v1060 = vsel %vm1059, %v1052, %v1056
      %v1061 = vand.u32 2147483647, %v988
      %vm1062 = vcmp.eq.f32.partialorder %v1061, 8.507059e+37
      %v1063 = vand.u32 %v988, 2147483648
      %v1064 = vor.u32 1.1754944e-38, %v1063
      %v1065 = vsel %vm1062, %v1064, %v1060
      %v1066 = vmul.f32 1.0, %v1065
      %v1067 = vrcp.pop %v989
      %v1068 = vmul.f32 %v989, %v1067
      %v1069 = vsub.f32 1.0, %v1068
      %v1070 = vmul.f32 %v1067, %v1069
      %v1071 = vadd.f32 %v1067, %v1070
      %vm1072 = vweird.f32 %v989
      %vm1073 = vweird.f32 %v1067
      %vm1074 = vmor %vm1072, %vm1073
      %v1075 = vsel %vm1074, %v1067, %v1071
      %v1076 = vand.u32 2147483647, %v989
      %vm1077 = vcmp.eq.f32.partialorder %v1076, 8.507059e+37
      %v1078 = vand.u32 %v989, 2147483648
      %v1079 = vor.u32 1.1754944e-38, %v1078
      %v1080 = vsel %vm1077, %v1079, %v1075
      %v1081 = vmul.f32 1.0, %v1080
      %v1082 = vrcp.pop %v990
      %v1083 = vmul.f32 %v990, %v1082
      %v1084 = vsub.f32 1.0, %v1083
      %v1085 = vmul.f32 %v1082, %v1084
      %v1086 = vadd.f32 %v1082, %v1085
      %vm1087 = vweird.f32 %v990
      %vm1088 = vweird.f32 %v1082
      %vm1089 = vmor %vm1087, %vm1088
      %v1090 = vsel %vm1089, %v1082, %v1086
      %v1091 = vand.u32 2147483647, %v990
      %vm1092 = vcmp.eq.f32.partialorder %v1091, 8.507059e+37
      %v1093 = vand.u32 %v990, 2147483648
      %v1094 = vor.u32 1.1754944e-38, %v1093
      %v1095 = vsel %vm1092, %v1094, %v1090
      %v1096 = vmul.f32 1.0, %v1095
      %v1097 = vrcp.pop %v991
      %v1098 = vmul.f32 %v991, %v1097
      %v1099 = vsub.f32 1.0, %v1098
      %v1100 = vmul.f32 %v1097, %v1099
      %v1101 = vadd.f32 %v1097, %v1100
      %vm1102 = vweird.f32 %v991
      %vm1103 = vweird.f32 %v1097
      %vm1104 = vmor %vm1102, %vm1103
      %v1105 = vsel %vm1104, %v1097, %v1101
      %v1106 = vand.u32 2147483647, %v991
      %vm1107 = vcmp.eq.f32.partialorder %v1106, 8.507059e+37
      %v1108 = vand.u32 %v991, 2147483648
      %v1109 = vor.u32 1.1754944e-38, %v1108
      %v1110 = vsel %vm1107, %v1109, %v1105
      %v1111 = vmul.f32 1.0, %v1110
      %v1112 = vld [vmem:[%s9] sm:$0xff]
      %v1113 = vld [vmem:[%s9 + $0x8] sm:$0xff]
      %v1114 = vld [vmem:[%s9 + $0x10] sm:$0xff]
      %v1115 = vld [vmem:[%s9 + $0x18] sm:$0xff]
      %vm1116 = vcmask 130048
      %v1118 = vsel %vm1116, %v854, 0
      %v1121 = vsel %vm1116, %v869, 0
      %v1124 = vsel %vm1116, %v884, 0
      %v1127 = vsel %vm1116, %v899, 0
      %v1130 = vsel %vm1116, %v914, 0
      %v1133 = vsel %vm1116, %v929, 0
      %v1136 = vsel %vm1116, %v944, 0
      %v1139 = vsel %vm1116, %v959, 0
      %1141 = vmatpush.msra.mxu0 0.0
      %1142 = vmatpush.msra.mxu0 0.0
      %1143 = vmatpush.msra.mxu0 0.0
      %1144 = vmatpush.msra.mxu0 0.0
      %1145 = vmatpush.msra.mxu0 0.0
      %1146 = vmatpush.msra.mxu0 0.0
      %1147 = vmatpush.msra.mxu0 0.0
      %1148 = vmatpush.msra.mxu0 0.0
      %1149 = vmatpush.msra.mxu0 0.0
      %1150 = vmatpush.msra.mxu0 0.0
      %1151 = vmatpush.msra.mxu0 0.0
      %1152 = vmatpush.msra.mxu0 0.0
      %1153 = vmatpush.msra.mxu0 0.0
      %1154 = vmatpush.msra.mxu0 0.0
      %1155 = vmatpush.msra.mxu0 %v1114
      %1156 = vmatpush.msra.mxu0 %v1112
      %1157 = vmatmul.f32.gmra.mxu0 %v1118
      %v1158 = vpop.f32.mrf.mxu0
      %v1159 = vadd.f32 0.0, %v1158
      %1160 = vmatmul.f32.gmra.mxu0 %v1121
      %v1161 = vpop.f32.mrf.mxu0
      %v1162 = vadd.f32 0.0, %v1161
      %1163 = vmatmul.f32.gmra.mxu0 %v1124
      %v1164 = vpop.f32.mrf.mxu0
      %v1165 = vadd.f32 0.0, %v1164
      %1166 = vmatmul.f32.gmra.mxu0 %v1127
      %v1167 = vpop.f32.mrf.mxu0
      %v1168 = vadd.f32 0.0, %v1167
      %1169 = vmatmul.f32.gmra.mxu0 %v1130
      %v1170 = vpop.f32.mrf.mxu0
      %v1171 = vadd.f32 0.0, %v1170
      %1172 = vmatmul.f32.gmra.mxu0 %v1133
      %v1173 = vpop.f32.mrf.mxu0
      %v1174 = vadd.f32 0.0, %v1173
      %1175 = vmatmul.f32.gmra.mxu0 %v1136
      %v1176 = vpop.f32.mrf.mxu0
      %v1177 = vadd.f32 0.0, %v1176
      %1178 = vmatmul.f32.gmra.mxu0 %v1139
      %v1179 = vpop.f32.mrf.mxu0
      %v1180 = vadd.f32 0.0, %v1179
      %1181 = vdwg.mxu0
      %1182 = vmatpush.msra.mxu0 0.0
      %1183 = vmatpush.msra.mxu0 0.0
      %1184 = vmatpush.msra.mxu0 0.0
      %1185 = vmatpush.msra.mxu0 0.0
      %1186 = vmatpush.msra.mxu0 0.0
      %1187 = vmatpush.msra.mxu0 0.0
      %1188 = vmatpush.msra.mxu0 0.0
      %1189 = vmatpush.msra.mxu0 0.0
      %1190 = vmatpush.msra.mxu0 0.0
      %1191 = vmatpush.msra.mxu0 0.0
      %1192 = vmatpush.msra.mxu0 0.0
      %1193 = vmatpush.msra.mxu0 0.0
      %1194 = vmatpush.msra.mxu0 0.0
      %1195 = vmatpush.msra.mxu0 0.0
      %1196 = vmatpush.msra.mxu0 %v1115
      %1197 = vmatpush.msra.mxu0 %v1113
      %1198 = vmatmul.f32.gmra.mxu0 %v1118
      %v1199 = vpop.f32.mrf.mxu0
      %v1200 = vadd.f32 0.0, %v1199
      %1201 = vmatmul.f32.gmra.mxu0 %v1121
      %v1202 = vpop.f32.mrf.mxu0
      %v1203 = vadd.f32 0.0, %v1202
      %1204 = vmatmul.f32.gmra.mxu0 %v1124
      %v1205 = vpop.f32.mrf.mxu0
      %v1206 = vadd.f32 0.0, %v1205
      %1207 = vmatmul.f32.gmra.mxu0 %v1127
      %v1208 = vpop.f32.mrf.mxu0
      %v1209 = vadd.f32 0.0, %v1208
      %1210 = vmatmul.f32.gmra.mxu0 %v1130
      %v1211 = vpop.f32.mrf.mxu0
      %v1212 = vadd.f32 0.0, %v1211
      %1213 = vmatmul.f32.gmra.mxu0 %v1133
      %v1214 = vpop.f32.mrf.mxu0
      %v1215 = vadd.f32 0.0, %v1214
      %1216 = vmatmul.f32.gmra.mxu0 %v1136
      %v1217 = vpop.f32.mrf.mxu0
      %v1218 = vadd.f32 0.0, %v1217
      %1219 = vmatmul.f32.gmra.mxu0 %v1139
      %v1220 = vpop.f32.mrf.mxu0
      %v1221 = vadd.f32 0.0, %v1220
      %1222 = vdwg.mxu0
      %v1223 = vld [vmem:[%s10] sm:$0xff]
      %v1224 = vld [vmem:[%s10 + $0x8] sm:$0xff]
      %v1225 = vld [vmem:[%s10 + $0x10] sm:$0xff]
      %v1226 = vld [vmem:[%s10 + $0x18] sm:$0xff]
      %v1228 = vsel %vm1116, %v1006, 0
      %v1231 = vsel %vm1116, %v1021, 0
      %v1234 = vsel %vm1116, %v1036, 0
      %v1237 = vsel %vm1116, %v1051, 0
      %v1240 = vsel %vm1116, %v1066, 0
      %v1243 = vsel %vm1116, %v1081, 0
      %v1246 = vsel %vm1116, %v1096, 0
      %v1249 = vsel %vm1116, %v1111, 0
      %1251 = vmatpush.msra.mxu0 0.0
      %1252 = vmatpush.msra.mxu0 0.0
      %1253 = vmatpush.msra.mxu0 0.0
      %1254 = vmatpush.msra.mxu0 0.0
      %1255 = vmatpush.msra.mxu0 0.0
      %1256 = vmatpush.msra.mxu0 0.0
      %1257 = vmatpush.msra.mxu0 0.0
      %1258 = vmatpush.msra.mxu0 0.0
      %1259 = vmatpush.msra.mxu0 0.0
      %1260 = vmatpush.msra.mxu0 0.0
      %1261 = vmatpush.msra.mxu0 0.0
      %1262 = vmatpush.msra.mxu0 0.0
      %1263 = vmatpush.msra.mxu0 0.0
      %1264 = vmatpush.msra.mxu0 0.0
      %1265 = vmatpush.msra.mxu0 %v1225
      %1266 = vmatpush.msra.mxu0 %v1223
      %1267 = vmatmul.f32.gmra.mxu0 %v1228
      %v1268 = vpop.f32.mrf.mxu0
      %v1269 = vadd.f32 0.0, %v1268
      %1270 = vmatmul.f32.gmra.mxu0 %v1231
      %v1271 = vpop.f32.mrf.mxu0
      %v1272 = vadd.f32 0.0, %v1271
      %1273 = vmatmul.f32.gmra.mxu0 %v1234
      %v1274 = vpop.f32.mrf.mxu0
      %v1275 = vadd.f32 0.0, %v1274
      %1276 = vmatmul.f32.gmra.mxu0 %v1237
      %v1277 = vpop.f32.mrf.mxu0
      %v1278 = vadd.f32 0.0, %v1277
      %1279 = vmatmul.f32.gmra.mxu0 %v1240
      %v1280 = vpop.f32.mrf.mxu0
      %v1281 = vadd.f32 0.0, %v1280
      %1282 = vmatmul.f32.gmra.mxu0 %v1243
      %v1283 = vpop.f32.mrf.mxu0
      %v1284 = vadd.f32 0.0, %v1283
      %1285 = vmatmul.f32.gmra.mxu0 %v1246
      %v1286 = vpop.f32.mrf.mxu0
      %v1287 = vadd.f32 0.0, %v1286
      %1288 = vmatmul.f32.gmra.mxu0 %v1249
      %v1289 = vpop.f32.mrf.mxu0
      %v1290 = vadd.f32 0.0, %v1289
      %1291 = vdwg.mxu0
      %1292 = vmatpush.msra.mxu0 0.0
      %1293 = vmatpush.msra.mxu0 0.0
      %1294 = vmatpush.msra.mxu0 0.0
      %1295 = vmatpush.msra.mxu0 0.0
      %1296 = vmatpush.msra.mxu0 0.0
      %1297 = vmatpush.msra.mxu0 0.0
      %1298 = vmatpush.msra.mxu0 0.0
      %1299 = vmatpush.msra.mxu0 0.0
      %1300 = vmatpush.msra.mxu0 0.0
      %1301 = vmatpush.msra.mxu0 0.0
      %1302 = vmatpush.msra.mxu0 0.0
      %1303 = vmatpush.msra.mxu0 0.0
      %1304 = vmatpush.msra.mxu0 0.0
      %1305 = vmatpush.msra.mxu0 0.0
      %1306 = vmatpush.msra.mxu0 %v1226
      %1307 = vmatpush.msra.mxu0 %v1224
      %1308 = vmatmul.f32.gmra.mxu0 %v1228
      %v1309 = vpop.f32.mrf.mxu0
      %v1310 = vadd.f32 0.0, %v1309
      %1311 = vmatmul.f32.gmra.mxu0 %v1231
      %v1312 = vpop.f32.mrf.mxu0
      %v1313 = vadd.f32 0.0, %v1312
      %1314 = vmatmul.f32.gmra.mxu0 %v1234
      %v1315 = vpop.f32.mrf.mxu0
      %v1316 = vadd.f32 0.0, %v1315
      %1317 = vmatmul.f32.gmra.mxu0 %v1237
      %v1318 = vpop.f32.mrf.mxu0
      %v1319 = vadd.f32 0.0, %v1318
      %1320 = vmatmul.f32.gmra.mxu0 %v1240
      %v1321 = vpop.f32.mrf.mxu0
      %v1322 = vadd.f32 0.0, %v1321
      %1323 = vmatmul.f32.gmra.mxu0 %v1243
      %v1324 = vpop.f32.mrf.mxu0
      %v1325 = vadd.f32 0.0, %v1324
      %1326 = vmatmul.f32.gmra.mxu0 %v1246
      %v1327 = vpop.f32.mrf.mxu0
      %v1328 = vadd.f32 0.0, %v1327
      %1329 = vmatmul.f32.gmra.mxu0 %v1249
      %v1330 = vpop.f32.mrf.mxu0
      %v1331 = vadd.f32 0.0, %v1330
      %1332 = vdwg.mxu0
      %v1333 = vmul.f32 %v1159, %v1269
      %v1334 = vmul.f32 %v1200, %v1310
      %v1335 = vmul.f32 %v1162, %v1272
      %v1336 = vmul.f32 %v1203, %v1313
      %v1337 = vmul.f32 %v1165, %v1275
      %v1338 = vmul.f32 %v1206, %v1316
      %v1339 = vmul.f32 %v1168, %v1278
      %v1340 = vmul.f32 %v1209, %v1319
      %v1341 = vmul.f32 %v1171, %v1281
      %v1342 = vmul.f32 %v1212, %v1322
      %v1343 = vmul.f32 %v1174, %v1284
      %v1344 = vmul.f32 %v1215, %v1325
      %v1345 = vmul.f32 %v1177, %v1287
      %v1346 = vmul.f32 %v1218, %v1328
      %v1347 = vmul.f32 %v1180, %v1290
      %v1348 = vmul.f32 %v1221, %v1331
      %v1349 = vmul.f32 %v387, %v1333
      %v1350 = vmul.f32 %v388, %v1334
      %v1351 = vmul.f32 %v389, %v1335
      %v1352 = vmul.f32 %v390, %v1336
      %v1353 = vmul.f32 %v391, %v1337
      %v1354 = vmul.f32 %v392, %v1338
      %v1355 = vmul.f32 %v393, %v1339
      %v1356 = vmul.f32 %v394, %v1340
      %v1357 = vmul.f32 %v395, %v1341
      %v1358 = vmul.f32 %v396, %v1342
      %v1359 = vmul.f32 %v397, %v1343
      %v1360 = vmul.f32 %v398, %v1344
      %v1361 = vmul.f32 %v399, %v1345
      %v1362 = vmul.f32 %v400, %v1346
      %v1363 = vmul.f32 %v401, %v1347
      %v1364 = vmul.f32 %v402, %v1348
      %1365 = vst [vmem:[%s386] sm:$0xff] %v1349
      %1366 = vst [vmem:[%s386 + $0x8] sm:$0xff] %v1350
      %1367 = vst [vmem:[%s386 + $0x10] sm:$0xff] %v1351
      %1368 = vst [vmem:[%s386 + $0x18] sm:$0xff] %v1352
      %1369 = vst [vmem:[%s386 + $0x20] sm:$0xff] %v1353
      %1370 = vst [vmem:[%s386 + $0x28] sm:$0xff] %v1354
      %1371 = vst [vmem:[%s386 + $0x30] sm:$0xff] %v1355
      %1372 = vst [vmem:[%s386 + $0x38] sm:$0xff] %v1356
      %1373 = vst [vmem:[%s386 + $0x40] sm:$0xff] %v1357
      %1374 = vst [vmem:[%s386 + $0x48] sm:$0xff] %v1358
      %1375 = vst [vmem:[%s386 + $0x50] sm:$0xff] %v1359
      %1376 = vst [vmem:[%s386 + $0x58] sm:$0xff] %v1360
      %1377 = vst [vmem:[%s386 + $0x60] sm:$0xff] %v1361
      %1378 = vst [vmem:[%s386 + $0x68] sm:$0xff] %v1362
      %1379 = vst [vmem:[%s386 + $0x70] sm:$0xff] %v1363
      %1380 = vst [vmem:[%s386 + $0x78] sm:$0xff] %v1364
      %p1381 = scmp.lt.s32.totalorder %s22, 1
      %s1382 = scalar_select %p1381, %s22, 1
      %s1383 = smul.addr %s1382, 16
      %s1384 = smul.addr %s1383, 8
      %s1385 = scalar_lea.vmem %s11, %s1384
      // Predicated region
      $region65: #{ca_layer.1} parent=63 // pred_check
        %p1386 = pneg %p276
      $region66: #{ca_layer.1} parent=63 // pred_check_branch
        %1388 = sbr.rel (%p1386) target = $region68
      $region67: #{ca_layer.1} parent=63 // pred_region
        _
      $region68: #{ca_layer.1} parent=63 // pred_fallthru
        _
    $region64: #{ca_layer.1} parent=5 // pred_fallthru
      _
    %p1389 = scmp.le.s32.totalorder 2, %s17
    // Predicated region
    $region69: #{ca_layer.1} parent=5 // pred_check
      %p1390 = pneg %p1389
    $region70: #{ca_layer.1} parent=5 // pred_check_branch
      %1392 = sbr.rel (%p1390) target = $region72
    $region71: #{ca_layer.1} parent=5 // pred_region
      %s1393 = ssub.s32 %s17, 2
      // Predicated region
      $region73: #{ca_layer.1} parent=71 // pred_check
        %p1394 = pneg %p282
      $region74: #{ca_layer.1} parent=71 // pred_check_branch
        %1396 = sbr.rel (%p1394) target = $region76
      $region75: #{ca_layer.1} parent=71 // pred_region
        %p1397 = scmp.lt.s32.totalorder %s23, 1
        %s1398 = scalar_select %p1397, %s23, 1
        %s1399 = smul.addr %s1398, 16
        %s1400 = smul.addr %s1399, 8
        %s1401 = scalar_lea.vmem %s11, %s1400
      $region76: #{ca_layer.1} parent=71 // pred_fallthru
        _
    $region72: #{ca_layer.1} parent=5 // pred_fallthru
      _
  $region6: #{ca_layer.1} parent=0 // loop_footer
    %s21 = sadd.s32 1, %s17
  $region7: #{ca_layer.1} parent=0 // loop_footer_branch
    %16 = sbr.rel target = $region3
  $region8: #{ca_layer.1} parent=0 // loop_exit
    _

</llo_original>
